<compile_context>
chip_gen: v7x
topology: tpu7x:2x2x1
jax: 0.10.0
libtpu: 0.0.40
codegen_flags: <defaults>
</compile_context>

<pallas_src>
from functools import partial

import jax
import jax.numpy as jnp
import numpy as np
from jax.experimental import pallas as pl
from jax.experimental.pallas import tpu as pltpu


def _round_up(v, m):
    return ((v + m - 1) // m) * m


def _mil_fused_kernel(x_ref, w_ref, b_ref, a_ref, ab_ref, s_ref, e_ref,
                      o_ref, wt_ref, *, m_chunk):
    """One grid step: a tile of `bt` bags, all channels fused.

    x_ref  : (bt, Mp, CDp)   instances (bf16), channels packed along lanes
    w_ref  : (CDp, 2*CHp)    block-diag [V^T | U^T] combined projection (bf16)
    b_ref  : (1, 2*CHp)      [V_bias | U_bias] (f32)
    a_ref  : (CHp, C)        block-diag attention vectors (bf16)
    ab_ref : (1, C)          attention bias (f32)
    s_ref  : (CDp, C)        per-channel ones selector for the zero mask (bf16)
    e_ref  : (C, CDp)        per-channel lane-broadcast matrix (f32)
    o_ref  : (bt, CDp)       pooled bag representations (lane-dense slab)
    wt_ref : (bt, Mp, C)     VMEM scratch holding the softmaxed attention weights
    """
    bt, mp, cdp = x_ref.shape
    chp = a_ref.shape[0]          # padded C*H (multiple of 128)
    c = a_ref.shape[1]            # true channel count C

    x = x_ref[...]                                   # (bt, Mp, CDp) bf16
    x2 = x.reshape(bt * mp, cdp)                     # layout no-op (Mp % 8 == 0)

    # Fused gated-attention MLP for all channels: bf16 operands, f32 accumulate.
    h_all = jnp.dot(x2, w_ref[...],
                    preferred_element_type=jnp.float32) + b_ref[...]   # (bt*Mp, 2*CHp)
    # CHp is a multiple of 128 so both slices are lane-tile aligned (no relayout).
    h = jnp.tanh(h_all[:, :chp]) * jax.nn.sigmoid(h_all[:, chp:])      # (bt*Mp, CHp)

    # Attention logits per channel.
    logits = jnp.dot(h.astype(a_ref.dtype), a_ref[...],
                     preferred_element_type=jnp.float32) + ab_ref[...]  # (bt*Mp, C)

    # Zero-instance mask (per channel).  abs-sum is accumulated in f32; with
    # bf16 x only |values| < ~1e-40 could be falsely masked (negligible).
    absx = jnp.dot(jnp.abs(x2), s_ref[...],
                   preferred_element_type=jnp.float32)                  # (bt*Mp, C)
    logits = jnp.where(absx > 0.0, logits, -jnp.inf)

    # Softmax over the instance axis M (per bag and channel).  Bags whose
    # instances are ALL zero produce NaN, matching torch masked_fill + softmax.
    logits3 = logits.reshape(bt, mp, c)
    mx = jnp.max(logits3, axis=1, keepdims=True)
    e = jnp.exp(logits3 - mx)
    denom = jnp.sum(e, axis=1, keepdims=True)
    wt_ref[...] = e * pl.reciprocal(denom, approx=False)   # exact recip (tiny tensor)

    # Pooling tail, chunked over M so the lane-broadcast weights and the
    # weighted product are never materialized at full (bt*Mp, CDp) f32 size.
    n_chunks = mp // m_chunk

    def chunk_contrib(i, acc):
        off = i * m_chunk
        if n_chunks > 1:
            off = pl.multiple_of(off, 8)
        wc = wt_ref[:, pl.ds(off, m_chunk), :]                          # (bt, mc, C) f32
        w_exp = jnp.dot(wc.reshape(bt * m_chunk, c), e_ref[...],
                        preferred_element_type=jnp.float32)             # (bt*mc, CDp)
        xc = x_ref[:, pl.ds(off, m_chunk), :].astype(jnp.float32)       # (bt, mc, CDp)
        return acc + jnp.sum(w_exp.reshape(bt, m_chunk, cdp) * xc, axis=1)

    acc0 = jnp.zeros((bt, cdp), jnp.float32)
    if n_chunks == 1:
        pooled = chunk_contrib(0, acc0)
    else:
        pooled = jax.lax.fori_loop(0, n_chunks, chunk_contrib, acc0)

    o_ref[...] = pooled.astype(o_ref.dtype)


def _build_fused_params(v_weight, v_bias, u_weight, u_bias, attn_weight,
                        attn_bias, *, cdp, chp, matmul_dtype=jnp.bfloat16):
    """Build block-diagonal fused parameters, padded to 128-aligned shapes."""
    C, H, D = v_weight.shape
    CD, CH = C * D, C * H
    eye = jnp.eye(C, dtype=jnp.float32)

    def pad2(a, rows, cols):
        return jnp.pad(a, ((0, rows - a.shape[0]), (0, cols - a.shape[1])))

    # Block-diagonal, pre-transposed: [c*D + d, c'*H + k] = W[c, k, d] * (c==c')
    def block_diag_t(w):
        return jnp.einsum('chd,ce->cdeh', w.astype(jnp.float32), eye).reshape(CD, CH)

    # V half in columns [0, CHp), U half in [CHp, 2*CHp) -> both 128-aligned.
    w_comb = jnp.concatenate(
        [pad2(block_diag_t(v_weight), cdp, chp),
         pad2(block_diag_t(u_weight), cdp, chp)], axis=1).astype(matmul_dtype)
    b_comb = jnp.concatenate(
        [pad2(v_bias.reshape(1, CH).astype(jnp.float32), 1, chp),
         pad2(u_bias.reshape(1, CH).astype(jnp.float32), 1, chp)], axis=1)

    # Block-diagonal attention vectors: [c*H + k, c'] = attn_w[c, k] * (c==c')
    a_comb = pad2(jnp.einsum('ch,ce->che', attn_weight[..., 0].astype(jnp.float32),
                             eye).reshape(CH, C), chp, C).astype(matmul_dtype)
    ab_comb = attn_bias.reshape(1, C).astype(jnp.float32)

    # Selector (CDp, C): sums |x| within each channel's D lanes.
    s_sel = pad2(jnp.repeat(eye, D, axis=0), cdp, C).astype(matmul_dtype)
    # Broadcast (C, CDp): replicates a per-channel scalar across its D lanes.
    # Kept in f32 (0/1 selector; preserves softmax-weight precision at no cost).
    e_bcast = pad2(jnp.repeat(eye, D, axis=1), C, cdp)
    return w_comb, b_comb, a_comb, ab_comb, s_sel, e_bcast


def _tpu_vmem_bytes():
    """Best-effort VMEM capacity query; conservative (v7x-class) fallback."""
    try:
        info = pltpu.get_tpu_info()
        v = getattr(info, "vmem_capacity_bytes", None)
        if v:
            return int(v)
    except Exception:
        pass
    return 64 << 20


def _choose_block_b(B, Mp, CDp, CHp, *, step_budget_bytes, row_target=512):
    """Pick the per-step bag tile.

    block_b must divide B and (being the sublane dim of the (bt, CDp) output
    block) be a multiple of 8 or equal to B.  Preference order:
      1. fit the estimated per-step working set in the generation-aware budget,
      2. give >= 2 grid steps (both v7x TCs busy, x DMA overlapped),
      3. reach >= row_target matmul rows per step (amortize MXU fill/drain and
         the ~0.35us/step pipeline overhead).
    NOTE: M itself is not tiled (softmax over M); bt*Mp must fit the budget.
    """
    # Rough per-(bag,instance) working-set bytes: double-buffered bf16 x block,
    # the bf16 x value, the f32 gated-MLP activations (2*CHp wide), and one
    # chunk-scale f32 pooling temp.
    per_row = (2 * 2 * CDp) + (2 * CDp) + (4 * 2 * CHp) + (2 * CDp)
    cands = [c for c in range(1, B + 1)
             if B % c == 0 and (c % 8 == 0 or c == B)]
    fitting = [c for c in cands if c * Mp * per_row <= step_budget_bytes] or cands[:1]

    def pick(pool):
        for c in pool:                      # ascending: smallest tile reaching target
            if c * Mp >= row_target:
                return c
        return pool[-1]

    multi = [c for c in fitting if B // c >= 2]
    return pick(multi) if multi else pick(fitting)


def _choose_m_chunk(Mp, bt, row_target=512):
    """Largest multiple-of-8 divisor of Mp keeping ~row_target rows per chunk."""
    bound = max(row_target, bt * 8)
    best = 8
    for mc in range(8, Mp + 1, 8):
        if Mp % mc == 0 and bt * mc <= bound:
            best = mc
    return best


def mil_channel_independent_pooling(x, v_weight, v_bias, u_weight, u_bias,
                                    attn_weight, attn_bias, *, block_b=None,
                                    m_chunk=None, matmul_dtype=jnp.bfloat16):
    """x: (B, M, C, D) float32  ->  (B, C, D) float32 (matches the PyTorch module)."""
    B, M, C, D = x.shape
    H = v_weight.shape[1]
    CD, CH = C * D, C * H
    CDp, CHp = _round_up(CD, 128), _round_up(CH, 128)
    Mp = _round_up(M, 8)
    out_dtype = x.dtype

    # Generation-aware budgets: v7x has 64 MiB VMEM per TC, v5e/v6e have 128 MiB.
    if _tpu_vmem_bytes() <= (96 << 20):
        step_budget, vmem_limit = 6 << 20, 48 << 20
    else:
        step_budget, vmem_limit = 24 << 20, 96 << 20

    w_comb, b_comb, a_comb, ab_comb, s_sel, e_bcast = _build_fused_params(
        v_weight, v_bias, u_weight, u_bias, attn_weight, attn_bias,
        cdp=CDp, chp=CHp, matmul_dtype=matmul_dtype)

    # Free trailing-dim collapse; store x in HBM at the matmul dtype (bf16 halves
    # DMA bytes).  Zero-padding to (Mp, CDp) keeps all in-kernel reshapes/stores
    # lane- and sublane-aligned; padded instances are killed by the zero mask.
    x_flat = x.reshape(B, M, CD).astype(matmul_dtype)
    if (Mp, CDp) != (M, CD):
        x_flat = jnp.pad(x_flat, ((0, 0), (0, Mp - M), (0, CDp - CD)))

    bt = block_b if block_b is not None else _choose_block_b(
        B, Mp, CDp, CHp, step_budget_bytes=step_budget)
    mc = m_chunk if m_chunk is not None else _choose_m_chunk(Mp, bt)
    grid = (B // bt,)

    def _run(single_buffer_consts):
        const_kw = dict(pipeline_mode=pl.Buffered(1)) if single_buffer_consts else {}

        def const_spec(shape):
            return pl.BlockSpec(shape, lambda b: (0, 0), **const_kw)

        return pl.pallas_call(
            partial(_mil_fused_kernel, m_chunk=mc),
            out_shape=jax.ShapeDtypeStruct((B, CDp), out_dtype),
            grid_spec=pltpu.PrefetchScalarGridSpec(
                num_scalar_prefetch=0,
                grid=grid,
                in_specs=[
                    pl.BlockSpec((bt, Mp, CDp), lambda b: (b, 0, 0)),   # x tile
                    const_spec((CDp, 2 * CHp)),                         # fused V|U weights
                    const_spec((1, 2 * CHp)),                           # fused biases
                    const_spec((CHp, C)),                               # attention vectors
                    const_spec((1, C)),                                 # attention bias
                    const_spec((CDp, C)),                               # mask selector
                    const_spec((C, CDp)),                               # lane-broadcast matrix
                ],
                out_specs=pl.BlockSpec((bt, CDp), lambda b: (b, 0)),
                scratch_shapes=[pltpu.VMEM((bt, Mp, C), jnp.float32)],  # attn weights
            ),
            compiler_params=pltpu.CompilerParams(
                dimension_semantics=("parallel",),
                vmem_limit_bytes=vmem_limit,
            ),
        )(x_flat, w_comb, b_comb, a_comb, ab_comb, s_sel, e_bcast)

    try:
        out = _run(True)          # single-buffer the VMEM-resident constants
    except Exception:
        out = _run(False)         # fallback: default double buffering

    # Free slice/reshape of the lane-dense slab back to (B, C, D).
    return out[:, :CD].reshape(B, C, D)


def _reference(x, v_weight, v_bias, u_weight, u_bias, attn_weight, attn_bias):
    """Pure-JAX f32 reference mirroring the PyTorch forward."""
    B, M, C, D = x.shape
    hp = jax.lax.Precision.HIGHEST
    xc = jnp.transpose(x, (2, 0, 1, 3))                    # (C, B, M, D)
    x_ = xc.reshape(C, B * M, D)
    h_v = jnp.tanh(jnp.einsum('cnd,chd->cnh', x_, v_weight, precision=hp)
                   + v_bias[:, None, :])
    h_u = jax.nn.sigmoid(jnp.einsum('cnd,chd->cnh', x_, u_weight, precision=hp)
                         + u_bias[:, None, :])
    h = h_v * h_u
    logits = jnp.einsum('cnh,chk->cnk', h, attn_weight, precision=hp) \
        + attn_bias[:, None, :]
    logits = logits.reshape(C, B, M, 1)
    mask = (jnp.sum(jnp.abs(xc), axis=-1) > 0)[..., None]
    logits = jnp.where(mask, logits, -jnp.inf)
    w = jax.nn.softmax(logits, axis=2)
    pooled = jnp.sum(w * xc, axis=2)                       # (C, B, D)
    return jnp.transpose(pooled, (1, 0, 2))                # (B, C, D)


if __name__ == "__main__":
    # Small shapes consistent with the module: (B, M, C, D), hidden H.
    B, M, C, D, H = 2, 8, 4, 32, 32

    key = jax.random.PRNGKey(0)
    kx, kv, ku, ka = jax.random.split(key, 4)

    x = jax.random.normal(kx, (B, M, C, D), dtype=jnp.float32)

    # Module-style randn parameters, scaled to realistic fan-in so the bf16
    # mixed-precision MXU path is checked at a meaningful (non-saturated)
    # operating point against the f32 reference.  Biases zero as in __init__.
    v_weight = jax.random.normal(kv, (C, H, D), dtype=jnp.float32) * (D ** -0.5)
    v_bias = jnp.zeros((C, H), dtype=jnp.float32)
    u_weight = jax.random.normal(ku, (C, H, D), dtype=jnp.float32) * (D ** -0.5)
    u_bias = jnp.zeros((C, H), dtype=jnp.float32)
    attn_weight = jax.random.normal(ka, (C, H, 1), dtype=jnp.float32) * (H ** -0.5)
    attn_bias = jnp.zeros((C, 1), dtype=jnp.float32)

    out = mil_channel_independent_pooling(
        x, v_weight, v_bias, u_weight, u_bias, attn_weight, attn_bias)
    out = jax.block_until_ready(out)
    assert out.shape == (B, C, D), out.shape

    ref = _reference(x, v_weight, v_bias, u_weight, u_bias, attn_weight,
                     attn_bias)
    # Tolerance sized for bf16 matmul operands with f32 accumulation.
    np.testing.assert_allclose(np.asarray(out), np.asarray(ref),
                               rtol=2e-2, atol=2e-2)

    print("KERNEL_OK")
</pallas_src>

<mosaic_0001>
module attributes {stable_mosaic.version = 11 : i64} {
  func.func @_mil_fused_kernel(%arg0: i32, %arg1: memref<2x8x128xbf16, #tpu.memory_space<vmem>>, %arg2: memref<128x256xbf16, #tpu.memory_space<vmem>>, %arg3: memref<1x256xf32, #tpu.memory_space<vmem>>, %arg4: memref<128x4xbf16, #tpu.memory_space<vmem>>, %arg5: memref<1x4xf32, #tpu.memory_space<vmem>>, %arg6: memref<128x4xbf16, #tpu.memory_space<vmem>>, %arg7: memref<4x128xf32, #tpu.memory_space<vmem>>, %arg8: memref<2x128xf32, #tpu.memory_space<vmem>>, %arg9: memref<2x8x4xf32, #tpu.memory_space<vmem>>) attributes {dimension_semantics = [#tpu.dimension_semantics<parallel>], iteration_bounds = array<i64: 1>, scalar_prefetch = 0 : i64, scratch_operands = 1 : i64, tpu.core_type = #tpu.core_type<tc>, window_params = [{transform_indices = @transform_0, window_bounds = array<i64: 2, 8, 128>}, {pipeline_mode = #tpu.pipeline_mode<synchronous>, transform_indices = @transform_1, window_bounds = array<i64: 128, 256>}, {pipeline_mode = #tpu.pipeline_mode<synchronous>, transform_indices = @transform_2, window_bounds = array<i64: 1, 256>}, {pipeline_mode = #tpu.pipeline_mode<synchronous>, transform_indices = @transform_3, window_bounds = array<i64: 128, 4>}, {pipeline_mode = #tpu.pipeline_mode<synchronous>, transform_indices = @transform_4, window_bounds = array<i64: 1, 4>}, {pipeline_mode = #tpu.pipeline_mode<synchronous>, transform_indices = @transform_5, window_bounds = array<i64: 128, 4>}, {pipeline_mode = #tpu.pipeline_mode<synchronous>, transform_indices = @transform_6, window_bounds = array<i64: 4, 128>}, {transform_indices = @transform_7, window_bounds = array<i64: 2, 128>}]} {
    %c0 = arith.constant 0 : index
    %c0_0 = arith.constant 0 : index
    %c0_1 = arith.constant 0 : index
    %0 = vector.load %arg1[%c0, %c0_0, %c0_1] : memref<2x8x128xbf16, #tpu.memory_space<vmem>>, vector<2x8x128xbf16>
    %1 = vector.shape_cast %0 : vector<2x8x128xbf16> to vector<16x128xbf16>
    %c0_2 = arith.constant 0 : index
    %c0_3 = arith.constant 0 : index
    %2 = vector.load %arg2[%c0_2, %c0_3] : memref<128x256xbf16, #tpu.memory_space<vmem>>, vector<128x256xbf16>
    %cst = arith.constant dense<0.000000e+00> : vector<16x256xf32>
    %3 = tpu.matmul %1, %2, %cst {dimension_numbers = #tpu.dot_dimension_numbers<[1], [0], [0], [1], [0, 0, 1, 1], [], []>} : vector<16x128xbf16>, vector<128x256xbf16>, vector<16x256xf32> -> vector<16x256xf32>
    %c0_4 = arith.constant 0 : index
    %c0_5 = arith.constant 0 : index
    %4 = vector.load %arg3[%c0_4, %c0_5] : memref<1x256xf32, #tpu.memory_space<vmem>>, vector<1x256xf32>
    %5 = vector.broadcast %4 : vector<1x256xf32> to vector<16x256xf32>
    %6 = arith.addf %3, %5 : vector<16x256xf32>
    %7 = vector.extract_strided_slice %6 {offsets = [0, 0], sizes = [16, 128], strides = [1, 1]} : vector<16x256xf32> to vector<16x128xf32>
    %8 = math.tanh %7 : vector<16x128xf32>
    %9 = vector.extract_strided_slice %6 {offsets = [0, 128], sizes = [16, 128], strides = [1, 1]} : vector<16x256xf32> to vector<16x128xf32>
    %10 = arith.negf %9 : vector<16x128xf32>
    %11 = math.exp %10 : vector<16x128xf32>
    %cst_6 = arith.constant 1.000000e+00 : f32
    %12 = vector.broadcast %cst_6 : f32 to vector<16x128xf32>
    %13 = arith.addf %12, %11 : vector<16x128xf32>
    %14 = arith.divf %12, %13 : vector<16x128xf32>
    %15 = arith.mulf %8, %14 : vector<16x128xf32>
    %16 = arith.truncf %15 : vector<16x128xf32> to vector<16x128xbf16>
    %c0_7 = arith.constant 0 : index
    %c0_8 = arith.constant 0 : index
    %17 = vector.load %arg4[%c0_7, %c0_8] : memref<128x4xbf16, #tpu.memory_space<vmem>>, vector<128x4xbf16>
    %cst_9 = arith.constant dense<0.000000e+00> : vector<16x4xf32>
    %18 = tpu.matmul %16, %17, %cst_9 {dimension_numbers = #tpu.dot_dimension_numbers<[1], [0], [0], [1], [0, 0, 1, 1], [], []>} : vector<16x128xbf16>, vector<128x4xbf16>, vector<16x4xf32> -> vector<16x4xf32>
    %c0_10 = arith.constant 0 : index
    %c0_11 = arith.constant 0 : index
    %19 = vector.load %arg5[%c0_10, %c0_11] : memref<1x4xf32, #tpu.memory_space<vmem>>, vector<1x4xf32>
    %20 = vector.broadcast %19 : vector<1x4xf32> to vector<16x4xf32>
    %21 = arith.addf %18, %20 : vector<16x4xf32>
    %22 = math.absf %1 : vector<16x128xbf16>
    %c0_12 = arith.constant 0 : index
    %c0_13 = arith.constant 0 : index
    %23 = vector.load %arg6[%c0_12, %c0_13] : memref<128x4xbf16, #tpu.memory_space<vmem>>, vector<128x4xbf16>
    %cst_14 = arith.constant dense<0.000000e+00> : vector<16x4xf32>
    %24 = tpu.matmul %22, %23, %cst_14 {dimension_numbers = #tpu.dot_dimension_numbers<[1], [0], [0], [1], [0, 0, 1, 1], [], []>} : vector<16x128xbf16>, vector<128x4xbf16>, vector<16x4xf32> -> vector<16x4xf32>
    %cst_15 = arith.constant 0.000000e+00 : f32
    %25 = vector.broadcast %cst_15 : f32 to vector<16x4xf32>
    %26 = arith.cmpf ogt, %24, %25 : vector<16x4xf32>
    %cst_16 = arith.constant 0xFF800000 : f32
    %27 = vector.broadcast %cst_16 : f32 to vector<16x4xf32>
    %28 = arith.select %26, %21, %27 : vector<16x4xi1>, vector<16x4xf32>
    %29 = vector.shape_cast %28 : vector<16x4xf32> to vector<2x8x4xf32>
    %cst_17 = arith.constant dense<0xFF800000> : vector<2x4xf32>
    %30 = vector.multi_reduction <maximumf>, %29, %cst_17 [1] : vector<2x8x4xf32> to vector<2x4xf32>
    %31 = vector.shape_cast %30 : vector<2x4xf32> to vector<2x1x4xf32>
    %32 = vector.broadcast %31 : vector<2x1x4xf32> to vector<2x8x4xf32>
    %33 = arith.subf %29, %32 : vector<2x8x4xf32>
    %34 = math.exp %33 : vector<2x8x4xf32>
    %cst_18 = arith.constant dense<0.000000e+00> : vector<2x4xf32>
    %35 = vector.multi_reduction <add>, %34, %cst_18 [1] : vector<2x8x4xf32> to vector<2x4xf32>
    %36 = vector.shape_cast %35 : vector<2x4xf32> to vector<2x1x4xf32>
    %37 = tpu.reciprocal %36 : vector<2x1x4xf32> -> vector<2x1x4xf32>
    %38 = vector.broadcast %37 : vector<2x1x4xf32> to vector<2x8x4xf32>
    %39 = arith.mulf %34, %38 : vector<2x8x4xf32>
    %c0_19 = arith.constant 0 : index
    %c0_20 = arith.constant 0 : index
    %c0_21 = arith.constant 0 : index
    %40 = vector.load %arg9[%c0_19, %c0_20, %c0_21] : memref<2x8x4xf32, #tpu.memory_space<vmem>>, vector<2x8x4xf32>
    tpu.vector_store %arg9[%c0_19, %c0_20, %c0_21], %39 {strides = array<i32>} : memref<2x8x4xf32, #tpu.memory_space<vmem>>, vector<2x8x4xf32>,
    %cst_22 = arith.constant 0.000000e+00 : f32
    %41 = vector.broadcast %cst_22 : f32 to vector<2x128xf32>
    %c0_23 = arith.constant 0 : index
    %c0_24 = arith.constant 0 : index
    %c0_25 = arith.constant 0 : index
    %42 = vector.load %arg9[%c0_23, %c0_24, %c0_25] : memref<2x8x4xf32, #tpu.memory_space<vmem>>, vector<2x8x4xf32>
    %43 = vector.shape_cast %42 : vector<2x8x4xf32> to vector<16x4xf32>
    %c0_26 = arith.constant 0 : index
    %c0_27 = arith.constant 0 : index
    %44 = vector.load %arg7[%c0_26, %c0_27] : memref<4x128xf32, #tpu.memory_space<vmem>>, vector<4x128xf32>
    %cst_28 = arith.constant dense<0.000000e+00> : vector<16x128xf32>
    %45 = tpu.matmul %43, %44, %cst_28 {dimension_numbers = #tpu.dot_dimension_numbers<[1], [0], [0], [1], [0, 0, 1, 1], [], []>} : vector<16x4xf32>, vector<4x128xf32>, vector<16x128xf32> -> vector<16x128xf32>
    %c0_29 = arith.constant 0 : index
    %c0_30 = arith.constant 0 : index
    %c0_31 = arith.constant 0 : index
    %46 = vector.load %arg1[%c0_29, %c0_30, %c0_31] : memref<2x8x128xbf16, #tpu.memory_space<vmem>>, vector<2x8x128xbf16>
    %47 = arith.extf %46 : vector<2x8x128xbf16> to vector<2x8x128xf32>
    %48 = vector.shape_cast %45 : vector<16x128xf32> to vector<2x8x128xf32>
    %49 = arith.mulf %48, %47 : vector<2x8x128xf32>
    %cst_32 = arith.constant dense<0.000000e+00> : vector<2x128xf32>
    %50 = vector.multi_reduction <add>, %49, %cst_32 [1] : vector<2x8x128xf32> to vector<2x128xf32>
    %51 = arith.addf %41, %50 : vector<2x128xf32>
    %c0_33 = arith.constant 0 : index
    %c0_34 = arith.constant 0 : index
    %52 = vector.load %arg8[%c0_33, %c0_34] : memref<2x128xf32, #tpu.memory_space<vmem>>, vector<2x128xf32>
    tpu.vector_store %arg8[%c0_33, %c0_34], %51 {strides = array<i32>} : memref<2x128xf32, #tpu.memory_space<vmem>>, vector<2x128xf32>,
    return
  }
  func.func @transform_0(%arg0: i32) -> (i32, i32, i32) {
    %c0_i32 = arith.constant 0 : i32
    %c0_i32_0 = arith.constant 0 : i32
    %c0_i32_1 = arith.constant 0 : i32
    return %arg0, %c0_i32, %c0_i32_0 : i32, i32, i32
  }
  func.func @transform_1(%arg0: i32) -> (i32, i32) {
    %c0_i32 = arith.constant 0 : i32
    %c0_i32_0 = arith.constant 0 : i32
    %c0_i32_1 = arith.constant 0 : i32
    return %c0_i32, %c0_i32_0 : i32, i32
  }
  func.func @transform_2(%arg0: i32) -> (i32, i32) {
    %c0_i32 = arith.constant 0 : i32
    %c0_i32_0 = arith.constant 0 : i32
    %c0_i32_1 = arith.constant 0 : i32
    return %c0_i32, %c0_i32_0 : i32, i32
  }
  func.func @transform_3(%arg0: i32) -> (i32, i32) {
    %c0_i32 = arith.constant 0 : i32
    %c0_i32_0 = arith.constant 0 : i32
    %c0_i32_1 = arith.constant 0 : i32
    return %c0_i32, %c0_i32_0 : i32, i32
  }
  func.func @transform_4(%arg0: i32) -> (i32, i32) {
    %c0_i32 = arith.constant 0 : i32
    %c0_i32_0 = arith.constant 0 : i32
    %c0_i32_1 = arith.constant 0 : i32
    return %c0_i32, %c0_i32_0 : i32, i32
  }
  func.func @transform_5(%arg0: i32) -> (i32, i32) {
    %c0_i32 = arith.constant 0 : i32
    %c0_i32_0 = arith.constant 0 : i32
    %c0_i32_1 = arith.constant 0 : i32
    return %c0_i32, %c0_i32_0 : i32, i32
  }
  func.func @transform_6(%arg0: i32) -> (i32, i32) {
    %c0_i32 = arith.constant 0 : i32
    %c0_i32_0 = arith.constant 0 : i32
    %c0_i32_1 = arith.constant 0 : i32
    return %c0_i32, %c0_i32_0 : i32, i32
  }
  func.func @transform_7(%arg0: i32) -> (i32, i32) {
    %c0_i32 = arith.constant 0 : i32
    %c0_i32_0 = arith.constant 0 : i32
    return %arg0, %c0_i32 : i32, i32
  }
}

module attributes {stable_mosaic.version = 11 : i64} {
  func.func @_mil_fused_kernel(%arg0: i32, %arg1: memref<2x8x128xbf16, #tpu.memory_space<vmem>>, %arg2: memref<128x256xbf16, #tpu.memory_space<vmem>>, %arg3: memref<1x256xf32, #tpu.memory_space<vmem>>, %arg4: memref<128x4xbf16, #tpu.memory_space<vmem>>, %arg5: memref<1x4xf32, #tpu.memory_space<vmem>>, %arg6: memref<128x4xbf16, #tpu.memory_space<vmem>>, %arg7: memref<4x128xf32, #tpu.memory_space<vmem>>, %arg8: memref<2x128xf32, #tpu.memory_space<vmem>>, %arg9: memref<2x8x4xf32, #tpu.memory_space<vmem>>) attributes {dimension_semantics = [#tpu.dimension_semantics<parallel>], iteration_bounds = array<i64: 1>, scalar_prefetch = 0 : i64, scratch_operands = 1 : i64, tpu.core_type = #tpu.core_type<tc>, window_params = [{transform_indices = @transform_0, window_bounds = array<i64: 2, 8, 128>}, {pipeline_mode = #tpu.pipeline_mode<synchronous>, transform_indices = @transform_1, window_bounds = array<i64: 128, 256>}, {pipeline_mode = #tpu.pipeline_mode<synchronous>, transform_indices = @transform_2, window_bounds = array<i64: 1, 256>}, {pipeline_mode = #tpu.pipeline_mode<synchronous>, transform_indices = @transform_3, window_bounds = array<i64: 128, 4>}, {pipeline_mode = #tpu.pipeline_mode<synchronous>, transform_indices = @transform_4, window_bounds = array<i64: 1, 4>}, {pipeline_mode = #tpu.pipeline_mode<synchronous>, transform_indices = @transform_5, window_bounds = array<i64: 128, 4>}, {pipeline_mode = #tpu.pipeline_mode<synchronous>, transform_indices = @transform_6, window_bounds = array<i64: 4, 128>}, {transform_indices = @transform_7, window_bounds = array<i64: 2, 128>}]} {
    %c0 = arith.constant 0 : index
    %c0_0 = arith.constant 0 : index
    %c0_1 = arith.constant 0 : index
    %0 = vector.load %arg1[%c0, %c0_0, %c0_1] : memref<2x8x128xbf16, #tpu.memory_space<vmem>>, vector<2x8x128xbf16>
    %1 = vector.shape_cast %0 : vector<2x8x128xbf16> to vector<16x128xbf16>
    %c0_2 = arith.constant 0 : index
    %c0_3 = arith.constant 0 : index
    %2 = vector.load %arg2[%c0_2, %c0_3] : memref<128x256xbf16, #tpu.memory_space<vmem>>, vector<128x256xbf16>
    %cst = arith.constant dense<0.000000e+00> : vector<16x256xf32>
    %3 = tpu.matmul %1, %2, %cst {dimension_numbers = #tpu.dot_dimension_numbers<[1], [0], [0], [1], [0, 0, 1, 1], [], []>} : vector<16x128xbf16>, vector<128x256xbf16>, vector<16x256xf32> -> vector<16x256xf32>
    %c0_4 = arith.constant 0 : index
    %c0_5 = arith.constant 0 : index
    %4 = vector.load %arg3[%c0_4, %c0_5] : memref<1x256xf32, #tpu.memory_space<vmem>>, vector<1x256xf32>
    %5 = vector.broadcast %4 : vector<1x256xf32> to vector<16x256xf32>
    %6 = arith.addf %3, %5 : vector<16x256xf32>
    %7 = vector.extract_strided_slice %6 {offsets = [0, 0], sizes = [16, 128], strides = [1, 1]} : vector<16x256xf32> to vector<16x128xf32>
    %8 = math.tanh %7 : vector<16x128xf32>
    %9 = vector.extract_strided_slice %6 {offsets = [0, 128], sizes = [16, 128], strides = [1, 1]} : vector<16x256xf32> to vector<16x128xf32>
    %10 = arith.negf %9 : vector<16x128xf32>
    %11 = math.exp %10 : vector<16x128xf32>
    %cst_6 = arith.constant 1.000000e+00 : f32
    %12 = vector.broadcast %cst_6 : f32 to vector<16x128xf32>
    %13 = arith.addf %12, %11 : vector<16x128xf32>
    %14 = arith.divf %12, %13 : vector<16x128xf32>
    %15 = arith.mulf %8, %14 : vector<16x128xf32>
    %16 = arith.truncf %15 : vector<16x128xf32> to vector<16x128xbf16>
    %c0_7 = arith.constant 0 : index
    %c0_8 = arith.constant 0 : index
    %17 = vector.load %arg4[%c0_7, %c0_8] : memref<128x4xbf16, #tpu.memory_space<vmem>>, vector<128x4xbf16>
    %cst_9 = arith.constant dense<0.000000e+00> : vector<16x4xf32>
    %18 = tpu.matmul %16, %17, %cst_9 {dimension_numbers = #tpu.dot_dimension_numbers<[1], [0], [0], [1], [0, 0, 1, 1], [], []>} : vector<16x128xbf16>, vector<128x4xbf16>, vector<16x4xf32> -> vector<16x4xf32>
    %c0_10 = arith.constant 0 : index
    %c0_11 = arith.constant 0 : index
    %19 = vector.load %arg5[%c0_10, %c0_11] : memref<1x4xf32, #tpu.memory_space<vmem>>, vector<1x4xf32>
    %20 = vector.broadcast %19 : vector<1x4xf32> to vector<16x4xf32>
    %21 = arith.addf %18, %20 : vector<16x4xf32>
    %22 = math.absf %1 : vector<16x128xbf16>
    %c0_12 = arith.constant 0 : index
    %c0_13 = arith.constant 0 : index
    %23 = vector.load %arg6[%c0_12, %c0_13] : memref<128x4xbf16, #tpu.memory_space<vmem>>, vector<128x4xbf16>
    %cst_14 = arith.constant dense<0.000000e+00> : vector<16x4xf32>
    %24 = tpu.matmul %22, %23, %cst_14 {dimension_numbers = #tpu.dot_dimension_numbers<[1], [0], [0], [1], [0, 0, 1, 1], [], []>} : vector<16x128xbf16>, vector<128x4xbf16>, vector<16x4xf32> -> vector<16x4xf32>
    %cst_15 = arith.constant 0.000000e+00 : f32
    %25 = vector.broadcast %cst_15 : f32 to vector<16x4xf32>
    %26 = arith.cmpf ogt, %24, %25 : vector<16x4xf32>
    %cst_16 = arith.constant 0xFF800000 : f32
    %27 = vector.broadcast %cst_16 : f32 to vector<16x4xf32>
    %28 = arith.select %26, %21, %27 : vector<16x4xi1>, vector<16x4xf32>
    %29 = vector.shape_cast %28 : vector<16x4xf32> to vector<2x8x4xf32>
    %cst_17 = arith.constant dense<0xFF800000> : vector<2x4xf32>
    %30 = vector.multi_reduction <maximumf>, %29, %cst_17 [1] : vector<2x8x4xf32> to vector<2x4xf32>
    %31 = vector.shape_cast %30 : vector<2x4xf32> to vector<2x1x4xf32>
    %32 = vector.broadcast %31 : vector<2x1x4xf32> to vector<2x8x4xf32>
    %33 = arith.subf %29, %32 : vector<2x8x4xf32>
    %34 = math.exp %33 : vector<2x8x4xf32>
    %cst_18 = arith.constant dense<0.000000e+00> : vector<2x4xf32>
    %35 = vector.multi_reduction <add>, %34, %cst_18 [1] : vector<2x8x4xf32> to vector<2x4xf32>
    %36 = vector.shape_cast %35 : vector<2x4xf32> to vector<2x1x4xf32>
    %37 = tpu.reciprocal %36 : vector<2x1x4xf32> -> vector<2x1x4xf32>
    %38 = vector.broadcast %37 : vector<2x1x4xf32> to vector<2x8x4xf32>
    %39 = arith.mulf %34, %38 : vector<2x8x4xf32>
    %c0_19 = arith.constant 0 : index
    %c0_20 = arith.constant 0 : index
    %c0_21 = arith.constant 0 : index
    %40 = vector.load %arg9[%c0_19, %c0_20, %c0_21] : memref<2x8x4xf32, #tpu.memory_space<vmem>>, vector<2x8x4xf32>
    tpu.vector_store %arg9[%c0_19, %c0_20, %c0_21], %39 {strides = array<i32>} : memref<2x8x4xf32, #tpu.memory_space<vmem>>, vector<2x8x4xf32>,
    %cst_22 = arith.constant 0.000000e+00 : f32
    %41 = vector.broadcast %cst_22 : f32 to vector<2x128xf32>
    %c0_23 = arith.constant 0 : index
    %c0_24 = arith.constant 0 : index
    %c0_25 = arith.constant 0 : index
    %42 = vector.load %arg9[%c0_23, %c0_24, %c0_25] : memref<2x8x4xf32, #tpu.memory_space<vmem>>, vector<2x8x4xf32>
    %43 = vector.shape_cast %42 : vector<2x8x4xf32> to vector<16x4xf32>
    %c0_26 = arith.constant 0 : index
    %c0_27 = arith.constant 0 : index
    %44 = vector.load %arg7[%c0_26, %c0_27] : memref<4x128xf32, #tpu.memory_space<vmem>>, vector<4x128xf32>
    %cst_28 = arith.constant dense<0.000000e+00> : vector<16x128xf32>
    %45 = tpu.matmul %43, %44, %cst_28 {dimension_numbers = #tpu.dot_dimension_numbers<[1], [0], [0], [1], [0, 0, 1, 1], [], []>} : vector<16x4xf32>, vector<4x128xf32>, vector<16x128xf32> -> vector<16x128xf32>
    %c0_29 = arith.constant 0 : index
    %c0_30 = arith.constant 0 : index
    %c0_31 = arith.constant 0 : index
    %46 = vector.load %arg1[%c0_29, %c0_30, %c0_31] : memref<2x8x128xbf16, #tpu.memory_space<vmem>>, vector<2x8x128xbf16>
    %47 = arith.extf %46 : vector<2x8x128xbf16> to vector<2x8x128xf32>
    %48 = vector.shape_cast %45 : vector<16x128xf32> to vector<2x8x128xf32>
    %49 = arith.mulf %48, %47 : vector<2x8x128xf32>
    %cst_32 = arith.constant dense<0.000000e+00> : vector<2x128xf32>
    %50 = vector.multi_reduction <add>, %49, %cst_32 [1] : vector<2x8x128xf32> to vector<2x128xf32>
    %51 = arith.addf %41, %50 : vector<2x128xf32>
    %c0_33 = arith.constant 0 : index
    %c0_34 = arith.constant 0 : index
    %52 = vector.load %arg8[%c0_33, %c0_34] : memref<2x128xf32, #tpu.memory_space<vmem>>, vector<2x128xf32>
    tpu.vector_store %arg8[%c0_33, %c0_34], %51 {strides = array<i32>} : memref<2x128xf32, #tpu.memory_space<vmem>>, vector<2x128xf32>,
    return
  }
  func.func @transform_0(%arg0: i32) -> (i32, i32, i32) {
    %c0_i32 = arith.constant 0 : i32
    %c0_i32_0 = arith.constant 0 : i32
    %c0_i32_1 = arith.constant 0 : i32
    return %arg0, %c0_i32, %c0_i32_0 : i32, i32, i32
  }
  func.func @transform_1(%arg0: i32) -> (i32, i32) {
    %c0_i32 = arith.constant 0 : i32
    %c0_i32_0 = arith.constant 0 : i32
    %c0_i32_1 = arith.constant 0 : i32
    return %c0_i32, %c0_i32_0 : i32, i32
  }
  func.func @transform_2(%arg0: i32) -> (i32, i32) {
    %c0_i32 = arith.constant 0 : i32
    %c0_i32_0 = arith.constant 0 : i32
    %c0_i32_1 = arith.constant 0 : i32
    return %c0_i32, %c0_i32_0 : i32, i32
  }
  func.func @transform_3(%arg0: i32) -> (i32, i32) {
    %c0_i32 = arith.constant 0 : i32
    %c0_i32_0 = arith.constant 0 : i32
    %c0_i32_1 = arith.constant 0 : i32
    return %c0_i32, %c0_i32_0 : i32, i32
  }
  func.func @transform_4(%arg0: i32) -> (i32, i32) {
    %c0_i32 = arith.constant 0 : i32
    %c0_i32_0 = arith.constant 0 : i32
    %c0_i32_1 = arith.constant 0 : i32
    return %c0_i32, %c0_i32_0 : i32, i32
  }
  func.func @transform_5(%arg0: i32) -> (i32, i32) {
    %c0_i32 = arith.constant 0 : i32
    %c0_i32_0 = arith.constant 0 : i32
    %c0_i32_1 = arith.constant 0 : i32
    return %c0_i32, %c0_i32_0 : i32, i32
  }
  func.func @transform_6(%arg0: i32) -> (i32, i32) {
    %c0_i32 = arith.constant 0 : i32
    %c0_i32_0 = arith.constant 0 : i32
    %c0_i32_1 = arith.constant 0 : i32
    return %c0_i32, %c0_i32_0 : i32, i32
  }
  func.func @transform_7(%arg0: i32) -> (i32, i32) {
    %c0_i32 = arith.constant 0 : i32
    %c0_i32_0 = arith.constant 0 : i32
    return %arg0, %c0_i32 : i32, i32
  }
}

</mosaic_0001>

<llo_original>
// kernel: tpu_custom_call.1
$region0: #{tpu_custom_call.1}
  #allocation0 [shape = 'u32[]', space=smem, size = 0x4, offset = 0x4, fixed_abs, tag = 'smem constant byte address 0x4 - core index']
  #allocation1 [shape = 'u32[144,128]{1,0:T(1,128)}', space=vmem, size = 0x12000, scoped, tag = 'internal scratch']
  #allocation2 [shape = 'f32[2,8,4]{2,1,0:T(8,128)}', space=vmem, size = 0x2000, scoped, tag = 'scratch operand']
  %s0 = inlined_call_operand.hbm [shape: bf16[2,8,128], index: 0, kind: input, shape index: {}]
  %s1 = inlined_call_operand.vmem [shape: bf16[128,256], index: 1, kind: input, shape index: {}]
  %s2 = inlined_call_operand.vmem [shape: f32[1,256], index: 2, kind: input, shape index: {}]
  %s3 = inlined_call_operand.vmem [shape: bf16[128,4], index: 3, kind: input, shape index: {}]
  %s4 = inlined_call_operand.vmem [shape: f32[1,4], index: 4, kind: input, shape index: {}]
  %s5 = inlined_call_operand.vmem [shape: bf16[128,4], index: 5, kind: input, shape index: {}]
  %s6 = inlined_call_operand.vmem [shape: f32[4,128], index: 6, kind: input, shape index: {}]
  %s7 = inlined_call_operand.hbm [shape: f32[2,128], index: 7, kind: output, shape index: {}]
  %s8 = sld [smem:[#allocation0]]
  $region42: #{tpu_custom_call.1} parent=0
    _
  %s10 = ssub.s32 1, %s8
  %s11 = scalar_select 0, %s10, %s8
  $region1: #{tpu_custom_call.1} parent=0
    #allocation3 [shape = 'u8[4096]{0}', space=vmem, size = 0x1000, scoped, tag = 'input window, operand 0, single buffered']
    #allocation4 [shape = 's32[1]{0}', space=sflag, size = 0x4, scoped, tag = 'scoped memory for tpu_custom_call.1']
    #allocation5 [shape = 's32[1]{0}', space=sflag, size = 0x4, scoped, tag = 'scoped memory for tpu_custom_call.1']
    #allocation6 [shape = 'u8[1024]{0}', space=vmem, size = 0x400, scoped, tag = 'output window, operand 0, single buffered']
    %12 = vsyncpa [#allocation4], 0
    %13 = vsyncpa [#allocation5], 0
    // Predicated region
    $region2: #{tpu_custom_call.1} parent=1 // pred_check
      _
    $region3: #{tpu_custom_call.1} parent=1 // pred_check_branch
      %15 = sbr.rel (0) target = $region5
    $region4: #{tpu_custom_call.1} parent=1 // pred_region
      %s17 = ssub.s32 128, 128
      %18 = vsyncadd [#allocation4], %s17
      %s19 = sshll.u32 [#allocation3], 4
      %s20 = int_to_ptr.vmem [resolvable:$true] %s19
      %25 = dma.hbm_to_vmem [thread:$0]  %s0, 128, %s20, [#allocation4], 64, 64, 4
    $region5: #{tpu_custom_call.1} parent=1 // pred_fallthru
      _
    // Predicated region
    $region6: #{tpu_custom_call.1} parent=1 // pred_check
      _
    $region7: #{tpu_custom_call.1} parent=1 // pred_check_branch
      %27 = sbr.rel (0) target = $region9
    $region8: #{tpu_custom_call.1} parent=1 // pred_region
      _
    $region9: #{tpu_custom_call.1} parent=1 // pred_fallthru
      _
    // Predicated region
    $region10: #{tpu_custom_call.1} parent=1 // pred_check
      _
    $region11: #{tpu_custom_call.1} parent=1 // pred_check_branch
      %29 = sbr.rel (0) target = $region13
    $region12: #{tpu_custom_call.1} parent=1 // pred_region
      _
    $region13: #{tpu_custom_call.1} parent=1 // pred_fallthru
      _
    // Predicated region
    $region14: #{tpu_custom_call.1} parent=1 // pred_check
      _
    $region15: #{tpu_custom_call.1} parent=1 // pred_check_branch
      %31 = sbr.rel (0) target = $region17
    $region16: #{tpu_custom_call.1} parent=1 // pred_region
      _
    $region17: #{tpu_custom_call.1} parent=1 // pred_fallthru
      _
    // Predicated region
    $region18: #{tpu_custom_call.1} parent=1 // pred_check
      _
    $region19: #{tpu_custom_call.1} parent=1 // pred_check_branch
      %33 = sbr.rel (0) target = $region21
    $region20: #{tpu_custom_call.1} parent=1 // pred_region
      _
    $region21: #{tpu_custom_call.1} parent=1 // pred_fallthru
      _
    // Predicated region
    $region22: #{tpu_custom_call.1} parent=1 // pred_check
      _
    $region23: #{tpu_custom_call.1} parent=1 // pred_check_branch
      %35 = sbr.rel (0) target = $region25
    $region24: #{tpu_custom_call.1} parent=1 // pred_region
      _
    $region25: #{tpu_custom_call.1} parent=1 // pred_fallthru
      _
    // Predicated region
    $region26: #{tpu_custom_call.1} parent=1 // pred_check
      _
    $region27: #{tpu_custom_call.1} parent=1 // pred_check_branch
      %37 = sbr.rel (0) target = $region29
    $region28: #{tpu_custom_call.1} parent=1 // pred_region
      _
    $region29: #{tpu_custom_call.1} parent=1 // pred_fallthru
      _
    // Predicated region
    $region30: #{tpu_custom_call.1} parent=1 // pred_check
      _
    $region31: #{tpu_custom_call.1} parent=1 // pred_check_branch
      %39 = sbr.rel (0) target = $region33
    $region32: #{tpu_custom_call.1} parent=1 // pred_region
      %40 = dma.done [#allocation4], 128
    $region33: #{tpu_custom_call.1} parent=1 // pred_fallthru
      _
    %v42 = vld [vmem:[#allocation3] sm:$0xf]
    %v43 = vld [vmem:[#allocation3 + $0x4] sm:$0xf]
    %v44 = vld [vmem:[%s1] sm:$0xff]
    %v45 = vld [vmem:[%s1 + $0x8] sm:$0xff]
    %v46 = vld [vmem:[%s1 + $0x10] sm:$0xff]
    %v47 = vld [vmem:[%s1 + $0x18] sm:$0xff]
    %v48 = vld [vmem:[%s1 + $0x20] sm:$0xff]
    %v49 = vld [vmem:[%s1 + $0x28] sm:$0xff]
    %v50 = vld [vmem:[%s1 + $0x30] sm:$0xff]
    %v51 = vld [vmem:[%s1 + $0x38] sm:$0xff]
    %v52 = vld [vmem:[%s1 + $0x40] sm:$0xff]
    %v53 = vld [vmem:[%s1 + $0x48] sm:$0xff]
    %v54 = vld [vmem:[%s1 + $0x50] sm:$0xff]
    %v55 = vld [vmem:[%s1 + $0x58] sm:$0xff]
    %v56 = vld [vmem:[%s1 + $0x60] sm:$0xff]
    %v57 = vld [vmem:[%s1 + $0x68] sm:$0xff]
    %v58 = vld [vmem:[%s1 + $0x70] sm:$0xff]
    %v59 = vld [vmem:[%s1 + $0x78] sm:$0xff]
    %v60 = vld [vmem:[%s2] sm:$0x3]
    %v62 = vlaneseq
    %v63 = vshrl.u32 %v62, 7
    %v64 = vsub.s32 0, %v63
    %v65 = vrot.slane %v60, %v64
    %v66 = vlaneseq
    %v67 = vshrl.u32 %v66, 7
    %v68 = vsub.s32 1, %v67
    %v69 = vrot.slane %v60, %v68
    %v74 = vunpack.c.l.b16 %v42
    %v75 = vunpack.c.l.b16 %v43
    %v76 = vpack.c.b16 %v75, %v74
    %v94 = vunpack.c.l.b16 %v44
    %v95 = vunpack.c.h.b16 %v44
    %v96 = vunpack.c.l.b16 %v45
    %v97 = vunpack.c.h.b16 %v45
    %v98 = vunpack.c.l.b16 %v46
    %v99 = vunpack.c.h.b16 %v46
    %v100 = vunpack.c.l.b16 %v47
    %v101 = vunpack.c.h.b16 %v47
    %v102 = vunpack.c.l.b16 %v48
    %v103 = vunpack.c.h.b16 %v48
    %v104 = vunpack.c.l.b16 %v49
    %v105 = vunpack.c.h.b16 %v49
    %v106 = vunpack.c.l.b16 %v50
    %v107 = vunpack.c.h.b16 %v50
    %v108 = vunpack.c.l.b16 %v51
    %v109 = vunpack.c.h.b16 %v51
    %v110 = vunpack.c.l.b16 %v52
    %v111 = vunpack.c.h.b16 %v52
    %v112 = vunpack.c.l.b16 %v53
    %v113 = vunpack.c.h.b16 %v53
    %v114 = vunpack.c.l.b16 %v54
    %v115 = vunpack.c.h.b16 %v54
    %v116 = vunpack.c.l.b16 %v55
    %v117 = vunpack.c.h.b16 %v55
    %v118 = vunpack.c.l.b16 %v56
    %v119 = vunpack.c.h.b16 %v56
    %v120 = vunpack.c.l.b16 %v57
    %v121 = vunpack.c.h.b16 %v57
    %v122 = vunpack.c.l.b16 %v58
    %v123 = vunpack.c.h.b16 %v58
    %v124 = vunpack.c.l.b16 %v59
    %v125 = vunpack.c.h.b16 %v59
    %v126 = vpack.c.b16 %v96, %v94
    %v127 = vpack.c.b16 %v97, %v95
    %v128 = vpack.c.b16 %v100, %v98
    %v129 = vpack.c.b16 %v101, %v99
    %v130 = vpack.c.b16 %v104, %v102
    %v131 = vpack.c.b16 %v105, %v103
    %v132 = vpack.c.b16 %v108, %v106
    %v133 = vpack.c.b16 %v109, %v107
    %v134 = vpack.c.b16 %v112, %v110
    %v135 = vpack.c.b16 %v113, %v111
    %v136 = vpack.c.b16 %v116, %v114
    %v137 = vpack.c.b16 %v117, %v115
    %v138 = vpack.c.b16 %v120, %v118
    %v139 = vpack.c.b16 %v121, %v119
    %v140 = vpack.c.b16 %v124, %v122
    %v141 = vpack.c.b16 %v125, %v123
    %158 = vmatprep.subr.bf16.mxu0 %v127
    %159 = vmatpush1.bf16.msra.mxu0 %v126
    %160 = vmatprep.subr.bf16.mxu0 %v129
    %161 = vmatpush1.bf16.msra.mxu0 %v128
    %162 = vmatprep.subr.bf16.mxu0 %v131
    %163 = vmatpush1.bf16.msra.mxu0 %v130
    %164 = vmatprep.subr.bf16.mxu0 %v133
    %165 = vmatpush1.bf16.msra.mxu0 %v132
    %166 = vmatprep.subr.bf16.mxu0 %v135
    %167 = vmatpush1.bf16.msra.mxu0 %v134
    %168 = vmatprep.subr.bf16.mxu0 %v137
    %169 = vmatpush1.bf16.msra.mxu0 %v136
    %170 = vmatprep.subr.bf16.mxu0 %v139
    %171 = vmatpush1.bf16.msra.mxu0 %v138
    %172 = vmatprep.subr.bf16.mxu0 %v141
    %173 = vmatpush1.bf16.msra.mxu0 %v140
    %174 = vmatprep.subr.bf16.mxu0 0
    %175 = vmatpush1.bf16.msra.mxu0 0
    %176 = vmatprep.subr.bf16.mxu0 0
    %177 = vmatpush1.bf16.msra.mxu0 0
    %178 = vmatprep.subr.bf16.mxu0 0
    %179 = vmatpush1.bf16.msra.mxu0 0
    %180 = vmatprep.subr.bf16.mxu0 0
    %181 = vmatpush1.bf16.msra.mxu0 0
    %182 = vmatprep.subr.bf16.mxu0 0
    %183 = vmatpush1.bf16.msra.mxu0 0
    %184 = vmatprep.subr.bf16.mxu0 0
    %185 = vmatpush1.bf16.msra.mxu0 0
    %186 = vmatprep.subr.bf16.mxu0 0
    %187 = vmatpush1.bf16.msra.mxu0 0
    %188 = vmatprep.subr.bf16.mxu0 0
    %189 = vmatpush1.bf16.msra.mxu0 0
    %190 = vmatprep.mubr.bf16.mxu0 0
    %191 = vmatmul.mubr.bf16.gmra.mrb[0].mxu0 %v76
    %v192 = vpop.f32.mrb[0].mxu0
    %v193 = vadd.f32 %v65, %v192
    %v194 = vpop.f32.mrb[0].mxu0
    %v195 = vadd.f32 %v69, %v194
    %v196 = vpop.f32.mrb[0].mxu0
    %v197 = vadd.f32 %v65, %v196
    %v198 = vpop.f32.mrb[0].mxu0
    %v199 = vadd.f32 %v69, %v198
    %200 = vdwg.mxu0
    %v201 = vtanh.pop %v193
    %v202 = vtanh.pop %v197
    %v203 = vxor.u32 %v195, 2147483648
    %v204 = vxor.u32 %v199, 2147483648
    %v205 = vmul.f32 %v203, 1.442695
    %v206 = vpow.pop %v205
    %v207 = vmul.f32 %v204, 1.442695
    %v208 = vpow.pop %v207
    %v209 = vadd.f32 %v206, 1.0
    %v210 = vadd.f32 %v208, 1.0
    %v211 = vrcp.pop %v209
    %v212 = vmul.f32 1.0, %v211
    %v213 = vrcp.pop %v210
    %v214 = vmul.f32 1.0, %v213
    %v215 = vmul.f32 %v201, %v212
    %v216 = vmul.f32 %v202, %v214
    %v217 = vpack.c.bf16 %v216, %v215
    %v218 = vld [vmem:[%s3] sm:$0xf]
    %v219 = vld [vmem:[%s3 + $0x4] sm:$0xf]
    %v220 = vld [vmem:[%s3 + $0x8] sm:$0xf]
    %v221 = vld [vmem:[%s3 + $0xc] sm:$0xf]
    %v222 = vld [vmem:[%s3 + $0x10] sm:$0xf]
    %v223 = vld [vmem:[%s3 + $0x14] sm:$0xf]
    %v224 = vld [vmem:[%s3 + $0x18] sm:$0xf]
    %v225 = vld [vmem:[%s3 + $0x1c] sm:$0xf]
    %v226 = vld [vmem:[%s3 + $0x20] sm:$0xf]
    %v227 = vld [vmem:[%s3 + $0x24] sm:$0xf]
    %v228 = vld [vmem:[%s3 + $0x28] sm:$0xf]
    %v229 = vld [vmem:[%s3 + $0x2c] sm:$0xf]
    %v230 = vld [vmem:[%s3 + $0x30] sm:$0xf]
    %v231 = vld [vmem:[%s3 + $0x34] sm:$0xf]
    %v232 = vld [vmem:[%s3 + $0x38] sm:$0xf]
    %v233 = vld [vmem:[%s3 + $0x3c] sm:$0xf]
    %v234 = vld [vmem:[%s4] sm:$0x1]
    %v236 = vlaneseq
    %v237 = vshrl.u32 %v236, 7
    %v238 = vsub.s32 0, %v237
    %v239 = vrot.slane %v234, %v238
    %v257 = vunpack.c.l.b16 %v218
    %v258 = vunpack.c.l.b16 %v219
    %v259 = vunpack.c.l.b16 %v220
    %v260 = vunpack.c.l.b16 %v221
    %v261 = vunpack.c.l.b16 %v222
    %v262 = vunpack.c.l.b16 %v223
    %v263 = vunpack.c.l.b16 %v224
    %v264 = vunpack.c.l.b16 %v225
    %v265 = vunpack.c.l.b16 %v226
    %v266 = vunpack.c.l.b16 %v227
    %v267 = vunpack.c.l.b16 %v228
    %v268 = vunpack.c.l.b16 %v229
    %v269 = vunpack.c.l.b16 %v230
    %v270 = vunpack.c.l.b16 %v231
    %v271 = vunpack.c.l.b16 %v232
    %v272 = vunpack.c.l.b16 %v233
    %v273 = vpack.c.b16 %v258, %v257
    %v274 = vpack.c.b16 %v260, %v259
    %v275 = vpack.c.b16 %v262, %v261
    %v276 = vpack.c.b16 %v264, %v263
    %v277 = vpack.c.b16 %v266, %v265
    %v278 = vpack.c.b16 %v268, %v267
    %v279 = vpack.c.b16 %v270, %v269
    %v280 = vpack.c.b16 %v272, %v271
    %289 = vmatprep.subr.bf16.mxu0 0
    %290 = vmatpush1.bf16.msra.mxu0 %v273
    %291 = vmatprep.subr.bf16.mxu0 0
    %292 = vmatpush1.bf16.msra.mxu0 %v274
    %293 = vmatprep.subr.bf16.mxu0 0
    %294 = vmatpush1.bf16.msra.mxu0 %v275
    %295 = vmatprep.subr.bf16.mxu0 0
    %296 = vmatpush1.bf16.msra.mxu0 %v276
    %297 = vmatprep.subr.bf16.mxu0 0
    %298 = vmatpush1.bf16.msra.mxu0 %v277
    %299 = vmatprep.subr.bf16.mxu0 0
    %300 = vmatpush1.bf16.msra.mxu0 %v278
    %301 = vmatprep.subr.bf16.mxu0 0
    %302 = vmatpush1.bf16.msra.mxu0 %v279
    %303 = vmatprep.subr.bf16.mxu0 0
    %304 = vmatpush1.bf16.msra.mxu0 %v280
    %305 = vmatprep.subr.bf16.mxu0 0
    %306 = vmatpush1.bf16.msra.mxu0 0
    %307 = vmatprep.subr.bf16.mxu0 0
    %308 = vmatpush1.bf16.msra.mxu0 0
    %309 = vmatprep.subr.bf16.mxu0 0
    %310 = vmatpush1.bf16.msra.mxu0 0
    %311 = vmatprep.subr.bf16.mxu0 0
    %312 = vmatpush1.bf16.msra.mxu0 0
    %313 = vmatprep.subr.bf16.mxu0 0
    %314 = vmatpush1.bf16.msra.mxu0 0
    %315 = vmatprep.subr.bf16.mxu0 0
    %316 = vmatpush1.bf16.msra.mxu0 0
    %317 = vmatprep.subr.bf16.mxu0 0
    %318 = vmatpush1.bf16.msra.mxu0 0
    %319 = vmatprep.subr.bf16.mxu0 0
    %320 = vmatpush1.bf16.msra.mxu0 0
    %321 = vmatprep.mubr.bf16.mxu0 0
    %322 = vmatmul.mubr.bf16.gmra.mrb[0].mxu0 %v217
    %v323 = vpop.f32.mrb[0].mxu0
    %v324 = vadd.f32 %v239, %v323
    %v325 = vpop.f32.mrb[0].mxu0
    %v326 = vpop.f32.mrb[0].mxu0
    %v327 = vadd.f32 %v239, %v326
    %v328 = vpop.f32.mrb[0].mxu0
    %329 = vdwg.mxu0
    %v330 = vand.u32 2147450879, %v42
    %v331 = vand.u32 2147450879, %v43
    %v332 = vld [vmem:[%s5] sm:$0xf]
    %v333 = vld [vmem:[%s5 + $0x4] sm:$0xf]
    %v334 = vld [vmem:[%s5 + $0x8] sm:$0xf]
    %v335 = vld [vmem:[%s5 + $0xc] sm:$0xf]
    %v336 = vld [vmem:[%s5 + $0x10] sm:$0xf]
    %v337 = vld [vmem:[%s5 + $0x14] sm:$0xf]
    %v338 = vld [vmem:[%s5 + $0x18] sm:$0xf]
    %v339 = vld [vmem:[%s5 + $0x1c] sm:$0xf]
    %v340 = vld [vmem:[%s5 + $0x20] sm:$0xf]
    %v341 = vld [vmem:[%s5 + $0x24] sm:$0xf]
    %v342 = vld [vmem:[%s5 + $0x28] sm:$0xf]
    %v343 = vld [vmem:[%s5 + $0x2c] sm:$0xf]
    %v344 = vld [vmem:[%s5 + $0x30] sm:$0xf]
    %v345 = vld [vmem:[%s5 + $0x34] sm:$0xf]
    %v346 = vld [vmem:[%s5 + $0x38] sm:$0xf]
    %v347 = vld [vmem:[%s5 + $0x3c] sm:$0xf]
    %v350 = vunpack.c.l.b16 %v330
    %v351 = vunpack.c.l.b16 %v331
    %v352 = vpack.c.b16 %v351, %v350
    %v370 = vunpack.c.l.b16 %v332
    %v371 = vunpack.c.l.b16 %v333
    %v372 = vunpack.c.l.b16 %v334
    %v373 = vunpack.c.l.b16 %v335
    %v374 = vunpack.c.l.b16 %v336
    %v375 = vunpack.c.l.b16 %v337
    %v376 = vunpack.c.l.b16 %v338
    %v377 = vunpack.c.l.b16 %v339
    %v378 = vunpack.c.l.b16 %v340
    %v379 = vunpack.c.l.b16 %v341
    %v380 = vunpack.c.l.b16 %v342
    %v381 = vunpack.c.l.b16 %v343
    %v382 = vunpack.c.l.b16 %v344
    %v383 = vunpack.c.l.b16 %v345
    %v384 = vunpack.c.l.b16 %v346
    %v385 = vunpack.c.l.b16 %v347
    %v386 = vpack.c.b16 %v371, %v370
    %v387 = vpack.c.b16 %v373, %v372
    %v388 = vpack.c.b16 %v375, %v374
    %v389 = vpack.c.b16 %v377, %v376
    %v390 = vpack.c.b16 %v379, %v378
    %v391 = vpack.c.b16 %v381, %v380
    %v392 = vpack.c.b16 %v383, %v382
    %v393 = vpack.c.b16 %v385, %v384
    %402 = vmatprep.subr.bf16.mxu0 0
    %403 = vmatpush1.bf16.msra.mxu0 %v386
    %404 = vmatprep.subr.bf16.mxu0 0
    %405 = vmatpush1.bf16.msra.mxu0 %v387
    %406 = vmatprep.subr.bf16.mxu0 0
    %407 = vmatpush1.bf16.msra.mxu0 %v388
    %408 = vmatprep.subr.bf16.mxu0 0
    %409 = vmatpush1.bf16.msra.mxu0 %v389
    %410 = vmatprep.subr.bf16.mxu0 0
    %411 = vmatpush1.bf16.msra.mxu0 %v390
    %412 = vmatprep.subr.bf16.mxu0 0
    %413 = vmatpush1.bf16.msra.mxu0 %v391
    %414 = vmatprep.subr.bf16.mxu0 0
    %415 = vmatpush1.bf16.msra.mxu0 %v392
    %416 = vmatprep.subr.bf16.mxu0 0
    %417 = vmatpush1.bf16.msra.mxu0 %v393
    %418 = vmatprep.subr.bf16.mxu0 0
    %419 = vmatpush1.bf16.msra.mxu0 0
    %420 = vmatprep.subr.bf16.mxu0 0
    %421 = vmatpush1.bf16.msra.mxu0 0
    %422 = vmatprep.subr.bf16.mxu0 0
    %423 = vmatpush1.bf16.msra.mxu0 0
    %424 = vmatprep.subr.bf16.mxu0 0
    %425 = vmatpush1.bf16.msra.mxu0 0
    %426 = vmatprep.subr.bf16.mxu0 0
    %427 = vmatpush1.bf16.msra.mxu0 0
    %428 = vmatprep.subr.bf16.mxu0 0
    %429 = vmatpush1.bf16.msra.mxu0 0
    %430 = vmatprep.subr.bf16.mxu0 0
    %431 = vmatpush1.bf16.msra.mxu0 0
    %432 = vmatprep.subr.bf16.mxu0 0
    %433 = vmatpush1.bf16.msra.mxu0 0
    %434 = vmatprep.mubr.bf16.mxu0 0
    %435 = vmatmul.mubr.bf16.gmra.mrb[0].mxu0 %v352
    %v436 = vpop.f32.mrb[0].mxu0
    %v437 = vadd.f32 0.0, %v436
    %v438 = vpop.f32.mrb[0].mxu0
    %v439 = vpop.f32.mrb[0].mxu0
    %v440 = vadd.f32 0.0, %v439
    %v441 = vpop.f32.mrb[0].mxu0
    %442 = vdwg.mxu0
    %vm443 = vcmp.gt.f32.partialorder %v437, 0.0
    %vm444 = vcmp.gt.f32.partialorder %v440, 0.0
    %v445 = vsel %vm443, %v324, -inf
    %v446 = vsel %vm444, %v327, -inf
    %vm447 = vcmask 31744
    %v448 = vsel %vm447, %v445, -inf
    %v449 = vrot.slane %v448, 4
    %v450 = vmax.f32 %v448, %v449
    %v451 = vrot.slane %v450, 2
    %v452 = vmax.f32 %v450, %v451
    %v453 = vrot.slane %v452, 1
    %v454 = vmax.f32 %v452, %v453
    %v455 = vsel %vm447, %v446, -inf
    %v456 = vrot.slane %v455, 4
    %v457 = vmax.f32 %v455, %v456
    %v458 = vrot.slane %v457, 2
    %v459 = vmax.f32 %v457, %v458
    %v460 = vrot.slane %v459, 1
    %v461 = vmax.f32 %v459, %v460
    %v462 = vsub.f32 %v445, %v454
    %v463 = vsub.f32 %v446, %v461
    %v464 = vmul.f32 %v462, 1.442695
    %v465 = vpow.pop %v464
    %v466 = vmul.f32 %v463, 1.442695
    %v467 = vpow.pop %v466
    %v468 = vsel %vm447, %v465, 0.0
    %v469 = vrot.slane %v468, 4
    %v470 = vadd.f32 %v468, %v469
    %v471 = vrot.slane %v470, 2
    %v472 = vadd.f32 %v470, %v471
    %v473 = vrot.slane %v472, 1
    %v474 = vadd.f32 %v472, %v473
    %v475 = vsel %vm447, %v467, 0.0
    %v476 = vrot.slane %v475, 4
    %v477 = vadd.f32 %v475, %v476
    %v478 = vrot.slane %v477, 2
    %v479 = vadd.f32 %v477, %v478
    %v480 = vrot.slane %v479, 1
    %v481 = vadd.f32 %v479, %v480
    %v482 = vrcp.pop %v474
    %v483 = vrcp.pop %v481
    %v484 = vmul.f32 %v465, %v482
    %v485 = vmul.f32 %v467, %v483
    %486 = vst.msk [vmem:[#allocation2] sm:$0xff] %vm447, %v484
    %487 = vst.msk [vmem:[#allocation2 + $0x8] sm:$0xff] %vm447, %v485
    %v488 = vld [vmem:[#allocation2] sm:$0xff]
    %v489 = vld [vmem:[#allocation2 + $0x8] sm:$0xff]
    %v490 = vld [vmem:[%s6] sm:$0xf]
    %v492 = vsel %vm447, %v488, 0
    %v495 = vsel %vm447, %v489, 0
    %vm497 = vcmask 1043456
    %v499 = vsel %vm497, %v490, 0
    %501 = vmatprep.subr.mxu0 0.0
    %502 = vmatpush1.msra.mxu0 %v499
    %503 = vmatprep.subr.mxu0 0.0
    %504 = vmatpush1.msra.mxu0 0.0
    %505 = vmatprep.subr.mxu0 0.0
    %506 = vmatpush1.msra.mxu0 0.0
    %507 = vmatprep.subr.mxu0 0.0
    %508 = vmatpush1.msra.mxu0 0.0
    %509 = vmatprep.subr.mxu0 0.0
    %510 = vmatpush1.msra.mxu0 0.0
    %511 = vmatprep.subr.mxu0 0.0
    %512 = vmatpush1.msra.mxu0 0.0
    %513 = vmatprep.subr.mxu0 0.0
    %514 = vmatpush1.msra.mxu0 0.0
    %515 = vmatprep.subr.mxu0 0.0
    %516 = vmatpush1.msra.mxu0 0.0
    %517 = vmatprep.subr.mxu0 0.0
    %518 = vmatpush1.msra.mxu0 0.0
    %519 = vmatprep.subr.mxu0 0.0
    %520 = vmatpush1.msra.mxu0 0.0
    %521 = vmatprep.subr.mxu0 0.0
    %522 = vmatpush1.msra.mxu0 0.0
    %523 = vmatprep.subr.mxu0 0.0
    %524 = vmatpush1.msra.mxu0 0.0
    %525 = vmatprep.subr.mxu0 0.0
    %526 = vmatpush1.msra.mxu0 0.0
    %527 = vmatprep.subr.mxu0 0.0
    %528 = vmatpush1.msra.mxu0 0.0
    %529 = vmatprep.subr.mxu0 0.0
    %530 = vmatpush1.msra.mxu0 0.0
    %531 = vmatprep.subr.mxu0 0.0
    %532 = vmatpush1.msra.mxu0 0.0
    %533 = vmatprep.subr.mxu0 0.0
    %534 = vmatpush1.msra.mxu0 0.0
    %535 = vmatprep.subr.mxu0 0.0
    %536 = vmatpush1.msra.mxu0 0.0
    %537 = vmatprep.subr.mxu0 0.0
    %538 = vmatpush1.msra.mxu0 0.0
    %539 = vmatprep.subr.mxu0 0.0
    %540 = vmatpush1.msra.mxu0 0.0
    %541 = vmatprep.subr.mxu0 0.0
    %542 = vmatpush1.msra.mxu0 0.0
    %543 = vmatprep.subr.mxu0 0.0
    %544 = vmatpush1.msra.mxu0 0.0
    %545 = vmatprep.subr.mxu0 0.0
    %546 = vmatpush1.msra.mxu0 0.0
    %547 = vmatprep.subr.mxu0 0.0
    %548 = vmatpush1.msra.mxu0 0.0
    %549 = vmatprep.subr.mxu0 0.0
    %550 = vmatpush1.msra.mxu0 0.0
    %551 = vmatprep.subr.mxu0 0.0
    %552 = vmatpush1.msra.mxu0 0.0
    %553 = vmatprep.subr.mxu0 0.0
    %554 = vmatpush1.msra.mxu0 0.0
    %555 = vmatprep.subr.mxu0 0.0
    %556 = vmatpush1.msra.mxu0 0.0
    %557 = vmatprep.subr.mxu0 0.0
    %558 = vmatpush1.msra.mxu0 0.0
    %559 = vmatprep.subr.mxu0 0.0
    %560 = vmatpush1.msra.mxu0 0.0
    %561 = vmatprep.subr.mxu0 0.0
    %562 = vmatpush1.msra.mxu0 0.0
    %563 = vmatprep.subr.mxu0 0.0
    %564 = vmatpush1.msra.mxu0 0.0
    %565 = vmatprep.mubr.f32.mxu0 0.0
    %566 = vmatmul.mubr.f32.gmra.mrb[0].mxu0 %v492
    %v567 = vpop.f32.mrb[0].mxu0
    %v568 = vadd.f32 0.0, %v567
    %v569 = vpop.f32.mrb[0].mxu0
    %570 = vmatprep.mubr.f32.mxu0 0.0
    %571 = vmatmul.mubr.f32.gmra.mrb[0].mxu0 %v495
    %v572 = vpop.f32.mrb[0].mxu0
    %v573 = vadd.f32 0.0, %v572
    %v574 = vpop.f32.mrb[0].mxu0
    %575 = vdwg.mxu0
    %v576 = vld [vmem:[#allocation3] sm:$0xf]
    %v577 = vld [vmem:[#allocation3 + $0x4] sm:$0xf]
    %v578 = vunpack.c.l.bf16 %v576
    %v579 = vunpack.c.l.bf16 %v577
    %v580 = vmul.f32 %v568, %v578
    %v581 = vmul.f32 %v573, %v579
    %v582 = vrot.slane %v580, 4
    %v583 = vadd.f32 %v580, %v582
    %v584 = vrot.slane %v583, 2
    %v585 = vadd.f32 %v583, %v584
    %v586 = vrot.slane %v585, 1
    %v587 = vadd.f32 %v585, %v586
    %v588 = vrot.slane %v581, 4
    %v589 = vadd.f32 %v581, %v588
    %v590 = vrot.slane %v589, 2
    %v591 = vadd.f32 %v589, %v590
    %v592 = vrot.slane %v591, 1
    %v593 = vadd.f32 %v591, %v592
    %v594 = vadd.f32 %v587, 0.0
    %v595 = vadd.f32 %v593, 0.0
    %vm598 = vcmask 1041409
    %v599 = vsel %vm598, %v595, %v594
    %601 = vst [vmem:[#allocation6] sm:$0x3] %v599
    // Predicated region
    $region34: #{tpu_custom_call.1} parent=1 // pred_check
      _
    $region35: #{tpu_custom_call.1} parent=1 // pred_check_branch
      %603 = sbr.rel (0) target = $region37
    $region36: #{tpu_custom_call.1} parent=1 // pred_region
      %s605 = ssub.s32 32, 32
      %606 = vsyncadd [#allocation5], %s605
      %s608 = sshll.u32 [#allocation6], 4
      %s609 = int_to_ptr.vmem [resolvable:$true] %s608
      %611 = dma.vmem_to_hbm [thread:$0]  %s609, 32, %s7, [#allocation5]
    $region37: #{tpu_custom_call.1} parent=1 // pred_fallthru
      _
    // Predicated region
    $region38: #{tpu_custom_call.1} parent=1 // pred_check
      _
    $region39: #{tpu_custom_call.1} parent=1 // pred_check_branch
      %613 = sbr.rel (0) target = $region41
    $region40: #{tpu_custom_call.1} parent=1 // pred_region
      %614 = dma.done [#allocation5], 32
    $region41: #{tpu_custom_call.1} parent=1 // pred_fallthru
      _
    %615 = vsyncpa [#allocation4], 1
    %616 = vsyncpa [#allocation5], 1

// kernel: tpu_custom_call.1
$region0: #{tpu_custom_call.1}
  #allocation0 [shape = 'u32[]', space=smem, size = 0x4, offset = 0x4, fixed_abs, tag = 'smem constant byte address 0x4 - core index']
  #allocation1 [shape = 'u32[144,128]{1,0:T(1,128)}', space=vmem, size = 0x12000, scoped, tag = 'internal scratch']
  #allocation2 [shape = 'f32[2,8,4]{2,1,0:T(8,128)}', space=vmem, size = 0x2000, scoped, tag = 'scratch operand']
  %s0 = inlined_call_operand.hbm [shape: bf16[2,8,128], index: 0, kind: input, shape index: {}]
  %s1 = inlined_call_operand.vmem [shape: bf16[128,256], index: 1, kind: input, shape index: {}]
  %s2 = inlined_call_operand.vmem [shape: f32[1,256], index: 2, kind: input, shape index: {}]
  %s3 = inlined_call_operand.vmem [shape: bf16[128,4], index: 3, kind: input, shape index: {}]
  %s4 = inlined_call_operand.vmem [shape: f32[1,4], index: 4, kind: input, shape index: {}]
  %s5 = inlined_call_operand.vmem [shape: bf16[128,4], index: 5, kind: input, shape index: {}]
  %s6 = inlined_call_operand.vmem [shape: f32[4,128], index: 6, kind: input, shape index: {}]
  %s7 = inlined_call_operand.hbm [shape: f32[2,128], index: 7, kind: output, shape index: {}]
  %s8 = sld [smem:[#allocation0]]
  $region42: #{tpu_custom_call.1} parent=0
    _
  %s10 = ssub.s32 1, %s8
  %s11 = scalar_select 0, %s10, %s8
  $region1: #{tpu_custom_call.1} parent=0
    #allocation3 [shape = 'u8[4096]{0}', space=vmem, size = 0x1000, scoped, tag = 'input window, operand 0, single buffered']
    #allocation4 [shape = 's32[1]{0}', space=sflag, size = 0x4, scoped, tag = 'scoped memory for tpu_custom_call.1']
    #allocation5 [shape = 's32[1]{0}', space=sflag, size = 0x4, scoped, tag = 'scoped memory for tpu_custom_call.1']
    #allocation6 [shape = 'u8[1024]{0}', space=vmem, size = 0x400, scoped, tag = 'output window, operand 0, single buffered']
    %12 = vsyncpa [#allocation4], 0
    %13 = vsyncpa [#allocation5], 0
    // Predicated region
    $region2: #{tpu_custom_call.1} parent=1 // pred_check
      _
    $region3: #{tpu_custom_call.1} parent=1 // pred_check_branch
      %15 = sbr.rel (0) target = $region5
    $region4: #{tpu_custom_call.1} parent=1 // pred_region
      %s17 = ssub.s32 128, 128
      %18 = vsyncadd [#allocation4], %s17
      %s19 = sshll.u32 [#allocation3], 4
      %s20 = int_to_ptr.vmem [resolvable:$true] %s19
      %25 = dma.hbm_to_vmem [thread:$0]  %s0, 128, %s20, [#allocation4], 64, 64, 4
    $region5: #{tpu_custom_call.1} parent=1 // pred_fallthru
      _
    // Predicated region
    $region6: #{tpu_custom_call.1} parent=1 // pred_check
      _
    $region7: #{tpu_custom_call.1} parent=1 // pred_check_branch
      %27 = sbr.rel (0) target = $region9
    $region8: #{tpu_custom_call.1} parent=1 // pred_region
      _
    $region9: #{tpu_custom_call.1} parent=1 // pred_fallthru
      _
    // Predicated region
    $region10: #{tpu_custom_call.1} parent=1 // pred_check
      _
    $region11: #{tpu_custom_call.1} parent=1 // pred_check_branch
      %29 = sbr.rel (0) target = $region13
    $region12: #{tpu_custom_call.1} parent=1 // pred_region
      _
    $region13: #{tpu_custom_call.1} parent=1 // pred_fallthru
      _
    // Predicated region
    $region14: #{tpu_custom_call.1} parent=1 // pred_check
      _
    $region15: #{tpu_custom_call.1} parent=1 // pred_check_branch
      %31 = sbr.rel (0) target = $region17
    $region16: #{tpu_custom_call.1} parent=1 // pred_region
      _
    $region17: #{tpu_custom_call.1} parent=1 // pred_fallthru
      _
    // Predicated region
    $region18: #{tpu_custom_call.1} parent=1 // pred_check
      _
    $region19: #{tpu_custom_call.1} parent=1 // pred_check_branch
      %33 = sbr.rel (0) target = $region21
    $region20: #{tpu_custom_call.1} parent=1 // pred_region
      _
    $region21: #{tpu_custom_call.1} parent=1 // pred_fallthru
      _
    // Predicated region
    $region22: #{tpu_custom_call.1} parent=1 // pred_check
      _
    $region23: #{tpu_custom_call.1} parent=1 // pred_check_branch
      %35 = sbr.rel (0) target = $region25
    $region24: #{tpu_custom_call.1} parent=1 // pred_region
      _
    $region25: #{tpu_custom_call.1} parent=1 // pred_fallthru
      _
    // Predicated region
    $region26: #{tpu_custom_call.1} parent=1 // pred_check
      _
    $region27: #{tpu_custom_call.1} parent=1 // pred_check_branch
      %37 = sbr.rel (0) target = $region29
    $region28: #{tpu_custom_call.1} parent=1 // pred_region
      _
    $region29: #{tpu_custom_call.1} parent=1 // pred_fallthru
      _
    // Predicated region
    $region30: #{tpu_custom_call.1} parent=1 // pred_check
      _
    $region31: #{tpu_custom_call.1} parent=1 // pred_check_branch
      %39 = sbr.rel (0) target = $region33
    $region32: #{tpu_custom_call.1} parent=1 // pred_region
      %40 = dma.done [#allocation4], 128
    $region33: #{tpu_custom_call.1} parent=1 // pred_fallthru
      _
    %v42 = vld [vmem:[#allocation3] sm:$0xf]
    %v43 = vld [vmem:[#allocation3 + $0x4] sm:$0xf]
    %v44 = vld [vmem:[%s1] sm:$0xff]
    %v45 = vld [vmem:[%s1 + $0x8] sm:$0xff]
    %v46 = vld [vmem:[%s1 + $0x10] sm:$0xff]
    %v47 = vld [vmem:[%s1 + $0x18] sm:$0xff]
    %v48 = vld [vmem:[%s1 + $0x20] sm:$0xff]
    %v49 = vld [vmem:[%s1 + $0x28] sm:$0xff]
    %v50 = vld [vmem:[%s1 + $0x30] sm:$0xff]
    %v51 = vld [vmem:[%s1 + $0x38] sm:$0xff]
    %v52 = vld [vmem:[%s1 + $0x40] sm:$0xff]
    %v53 = vld [vmem:[%s1 + $0x48] sm:$0xff]
    %v54 = vld [vmem:[%s1 + $0x50] sm:$0xff]
    %v55 = vld [vmem:[%s1 + $0x58] sm:$0xff]
    %v56 = vld [vmem:[%s1 + $0x60] sm:$0xff]
    %v57 = vld [vmem:[%s1 + $0x68] sm:$0xff]
    %v58 = vld [vmem:[%s1 + $0x70] sm:$0xff]
    %v59 = vld [vmem:[%s1 + $0x78] sm:$0xff]
    %v60 = vld [vmem:[%s2] sm:$0x3]
    %v62 = vlaneseq
    %v63 = vshrl.u32 %v62, 7
    %v64 = vsub.s32 0, %v63
    %v65 = vrot.slane %v60, %v64
    %v66 = vlaneseq
    %v67 = vshrl.u32 %v66, 7
    %v68 = vsub.s32 1, %v67
    %v69 = vrot.slane %v60, %v68
    %v74 = vunpack.c.l.b16 %v42
    %v75 = vunpack.c.l.b16 %v43
    %v76 = vpack.c.b16 %v75, %v74
    %v94 = vunpack.c.l.b16 %v44
    %v95 = vunpack.c.h.b16 %v44
    %v96 = vunpack.c.l.b16 %v45
    %v97 = vunpack.c.h.b16 %v45
    %v98 = vunpack.c.l.b16 %v46
    %v99 = vunpack.c.h.b16 %v46
    %v100 = vunpack.c.l.b16 %v47
    %v101 = vunpack.c.h.b16 %v47
    %v102 = vunpack.c.l.b16 %v48
    %v103 = vunpack.c.h.b16 %v48
    %v104 = vunpack.c.l.b16 %v49
    %v105 = vunpack.c.h.b16 %v49
    %v106 = vunpack.c.l.b16 %v50
    %v107 = vunpack.c.h.b16 %v50
    %v108 = vunpack.c.l.b16 %v51
    %v109 = vunpack.c.h.b16 %v51
    %v110 = vunpack.c.l.b16 %v52
    %v111 = vunpack.c.h.b16 %v52
    %v112 = vunpack.c.l.b16 %v53
    %v113 = vunpack.c.h.b16 %v53
    %v114 = vunpack.c.l.b16 %v54
    %v115 = vunpack.c.h.b16 %v54
    %v116 = vunpack.c.l.b16 %v55
    %v117 = vunpack.c.h.b16 %v55
    %v118 = vunpack.c.l.b16 %v56
    %v119 = vunpack.c.h.b16 %v56
    %v120 = vunpack.c.l.b16 %v57
    %v121 = vunpack.c.h.b16 %v57
    %v122 = vunpack.c.l.b16 %v58
    %v123 = vunpack.c.h.b16 %v58
    %v124 = vunpack.c.l.b16 %v59
    %v125 = vunpack.c.h.b16 %v59
    %v126 = vpack.c.b16 %v96, %v94
    %v127 = vpack.c.b16 %v97, %v95
    %v128 = vpack.c.b16 %v100, %v98
    %v129 = vpack.c.b16 %v101, %v99
    %v130 = vpack.c.b16 %v104, %v102
    %v131 = vpack.c.b16 %v105, %v103
    %v132 = vpack.c.b16 %v108, %v106
    %v133 = vpack.c.b16 %v109, %v107
    %v134 = vpack.c.b16 %v112, %v110
    %v135 = vpack.c.b16 %v113, %v111
    %v136 = vpack.c.b16 %v116, %v114
    %v137 = vpack.c.b16 %v117, %v115
    %v138 = vpack.c.b16 %v120, %v118
    %v139 = vpack.c.b16 %v121, %v119
    %v140 = vpack.c.b16 %v124, %v122
    %v141 = vpack.c.b16 %v125, %v123
    %158 = vmatprep.subr.bf16.mxu0 %v127
    %159 = vmatpush1.bf16.msra.mxu0 %v126
    %160 = vmatprep.subr.bf16.mxu0 %v129
    %161 = vmatpush1.bf16.msra.mxu0 %v128
    %162 = vmatprep.subr.bf16.mxu0 %v131
    %163 = vmatpush1.bf16.msra.mxu0 %v130
    %164 = vmatprep.subr.bf16.mxu0 %v133
    %165 = vmatpush1.bf16.msra.mxu0 %v132
    %166 = vmatprep.subr.bf16.mxu0 %v135
    %167 = vmatpush1.bf16.msra.mxu0 %v134
    %168 = vmatprep.subr.bf16.mxu0 %v137
    %169 = vmatpush1.bf16.msra.mxu0 %v136
    %170 = vmatprep.subr.bf16.mxu0 %v139
    %171 = vmatpush1.bf16.msra.mxu0 %v138
    %172 = vmatprep.subr.bf16.mxu0 %v141
    %173 = vmatpush1.bf16.msra.mxu0 %v140
    %174 = vmatprep.subr.bf16.mxu0 0
    %175 = vmatpush1.bf16.msra.mxu0 0
    %176 = vmatprep.subr.bf16.mxu0 0
    %177 = vmatpush1.bf16.msra.mxu0 0
    %178 = vmatprep.subr.bf16.mxu0 0
    %179 = vmatpush1.bf16.msra.mxu0 0
    %180 = vmatprep.subr.bf16.mxu0 0
    %181 = vmatpush1.bf16.msra.mxu0 0
    %182 = vmatprep.subr.bf16.mxu0 0
    %183 = vmatpush1.bf16.msra.mxu0 0
    %184 = vmatprep.subr.bf16.mxu0 0
    %185 = vmatpush1.bf16.msra.mxu0 0
    %186 = vmatprep.subr.bf16.mxu0 0
    %187 = vmatpush1.bf16.msra.mxu0 0
    %188 = vmatprep.subr.bf16.mxu0 0
    %189 = vmatpush1.bf16.msra.mxu0 0
    %190 = vmatprep.mubr.bf16.mxu0 0
    %191 = vmatmul.mubr.bf16.gmra.mrb[0].mxu0 %v76
    %v192 = vpop.f32.mrb[0].mxu0
    %v193 = vadd.f32 %v65, %v192
    %v194 = vpop.f32.mrb[0].mxu0
    %v195 = vadd.f32 %v69, %v194
    %v196 = vpop.f32.mrb[0].mxu0
    %v197 = vadd.f32 %v65, %v196
    %v198 = vpop.f32.mrb[0].mxu0
    %v199 = vadd.f32 %v69, %v198
    %200 = vdwg.mxu0
    %v201 = vtanh.pop %v193
    %v202 = vtanh.pop %v197
    %v203 = vxor.u32 %v195, 2147483648
    %v204 = vxor.u32 %v199, 2147483648
    %v205 = vmul.f32 %v203, 1.442695
    %v206 = vpow.pop %v205
    %v207 = vmul.f32 %v204, 1.442695
    %v208 = vpow.pop %v207
    %v209 = vadd.f32 %v206, 1.0
    %v210 = vadd.f32 %v208, 1.0
    %v211 = vrcp.pop %v209
    %v212 = vmul.f32 1.0, %v211
    %v213 = vrcp.pop %v210
    %v214 = vmul.f32 1.0, %v213
    %v215 = vmul.f32 %v201, %v212
    %v216 = vmul.f32 %v202, %v214
    %v217 = vpack.c.bf16 %v216, %v215
    %v218 = vld [vmem:[%s3] sm:$0xf]
    %v219 = vld [vmem:[%s3 + $0x4] sm:$0xf]
    %v220 = vld [vmem:[%s3 + $0x8] sm:$0xf]
    %v221 = vld [vmem:[%s3 + $0xc] sm:$0xf]
    %v222 = vld [vmem:[%s3 + $0x10] sm:$0xf]
    %v223 = vld [vmem:[%s3 + $0x14] sm:$0xf]
    %v224 = vld [vmem:[%s3 + $0x18] sm:$0xf]
    %v225 = vld [vmem:[%s3 + $0x1c] sm:$0xf]
    %v226 = vld [vmem:[%s3 + $0x20] sm:$0xf]
    %v227 = vld [vmem:[%s3 + $0x24] sm:$0xf]
    %v228 = vld [vmem:[%s3 + $0x28] sm:$0xf]
    %v229 = vld [vmem:[%s3 + $0x2c] sm:$0xf]
    %v230 = vld [vmem:[%s3 + $0x30] sm:$0xf]
    %v231 = vld [vmem:[%s3 + $0x34] sm:$0xf]
    %v232 = vld [vmem:[%s3 + $0x38] sm:$0xf]
    %v233 = vld [vmem:[%s3 + $0x3c] sm:$0xf]
    %v234 = vld [vmem:[%s4] sm:$0x1]
    %v236 = vlaneseq
    %v237 = vshrl.u32 %v236, 7
    %v238 = vsub.s32 0, %v237
    %v239 = vrot.slane %v234, %v238
    %v257 = vunpack.c.l.b16 %v218
    %v258 = vunpack.c.l.b16 %v219
    %v259 = vunpack.c.l.b16 %v220
    %v260 = vunpack.c.l.b16 %v221
    %v261 = vunpack.c.l.b16 %v222
    %v262 = vunpack.c.l.b16 %v223
    %v263 = vunpack.c.l.b16 %v224
    %v264 = vunpack.c.l.b16 %v225
    %v265 = vunpack.c.l.b16 %v226
    %v266 = vunpack.c.l.b16 %v227
    %v267 = vunpack.c.l.b16 %v228
    %v268 = vunpack.c.l.b16 %v229
    %v269 = vunpack.c.l.b16 %v230
    %v270 = vunpack.c.l.b16 %v231
    %v271 = vunpack.c.l.b16 %v232
    %v272 = vunpack.c.l.b16 %v233
    %v273 = vpack.c.b16 %v258, %v257
    %v274 = vpack.c.b16 %v260, %v259
    %v275 = vpack.c.b16 %v262, %v261
    %v276 = vpack.c.b16 %v264, %v263
    %v277 = vpack.c.b16 %v266, %v265
    %v278 = vpack.c.b16 %v268, %v267
    %v279 = vpack.c.b16 %v270, %v269
    %v280 = vpack.c.b16 %v272, %v271
    %289 = vmatprep.subr.bf16.mxu0 0
    %290 = vmatpush1.bf16.msra.mxu0 %v273
    %291 = vmatprep.subr.bf16.mxu0 0
    %292 = vmatpush1.bf16.msra.mxu0 %v274
    %293 = vmatprep.subr.bf16.mxu0 0
    %294 = vmatpush1.bf16.msra.mxu0 %v275
    %295 = vmatprep.subr.bf16.mxu0 0
    %296 = vmatpush1.bf16.msra.mxu0 %v276
    %297 = vmatprep.subr.bf16.mxu0 0
    %298 = vmatpush1.bf16.msra.mxu0 %v277
    %299 = vmatprep.subr.bf16.mxu0 0
    %300 = vmatpush1.bf16.msra.mxu0 %v278
    %301 = vmatprep.subr.bf16.mxu0 0
    %302 = vmatpush1.bf16.msra.mxu0 %v279
    %303 = vmatprep.subr.bf16.mxu0 0
    %304 = vmatpush1.bf16.msra.mxu0 %v280
    %305 = vmatprep.subr.bf16.mxu0 0
    %306 = vmatpush1.bf16.msra.mxu0 0
    %307 = vmatprep.subr.bf16.mxu0 0
    %308 = vmatpush1.bf16.msra.mxu0 0
    %309 = vmatprep.subr.bf16.mxu0 0
    %310 = vmatpush1.bf16.msra.mxu0 0
    %311 = vmatprep.subr.bf16.mxu0 0
    %312 = vmatpush1.bf16.msra.mxu0 0
    %313 = vmatprep.subr.bf16.mxu0 0
    %314 = vmatpush1.bf16.msra.mxu0 0
    %315 = vmatprep.subr.bf16.mxu0 0
    %316 = vmatpush1.bf16.msra.mxu0 0
    %317 = vmatprep.subr.bf16.mxu0 0
    %318 = vmatpush1.bf16.msra.mxu0 0
    %319 = vmatprep.subr.bf16.mxu0 0
    %320 = vmatpush1.bf16.msra.mxu0 0
    %321 = vmatprep.mubr.bf16.mxu0 0
    %322 = vmatmul.mubr.bf16.gmra.mrb[0].mxu0 %v217
    %v323 = vpop.f32.mrb[0].mxu0
    %v324 = vadd.f32 %v239, %v323
    %v325 = vpop.f32.mrb[0].mxu0
    %v326 = vpop.f32.mrb[0].mxu0
    %v327 = vadd.f32 %v239, %v326
    %v328 = vpop.f32.mrb[0].mxu0
    %329 = vdwg.mxu0
    %v330 = vand.u32 2147450879, %v42
    %v331 = vand.u32 2147450879, %v43
    %v332 = vld [vmem:[%s5] sm:$0xf]
    %v333 = vld [vmem:[%s5 + $0x4] sm:$0xf]
    %v334 = vld [vmem:[%s5 + $0x8] sm:$0xf]
    %v335 = vld [vmem:[%s5 + $0xc] sm:$0xf]
    %v336 = vld [vmem:[%s5 + $0x10] sm:$0xf]
    %v337 = vld [vmem:[%s5 + $0x14] sm:$0xf]
    %v338 = vld [vmem:[%s5 + $0x18] sm:$0xf]
    %v339 = vld [vmem:[%s5 + $0x1c] sm:$0xf]
    %v340 = vld [vmem:[%s5 + $0x20] sm:$0xf]
    %v341 = vld [vmem:[%s5 + $0x24] sm:$0xf]
    %v342 = vld [vmem:[%s5 + $0x28] sm:$0xf]
    %v343 = vld [vmem:[%s5 + $0x2c] sm:$0xf]
    %v344 = vld [vmem:[%s5 + $0x30] sm:$0xf]
    %v345 = vld [vmem:[%s5 + $0x34] sm:$0xf]
    %v346 = vld [vmem:[%s5 + $0x38] sm:$0xf]
    %v347 = vld [vmem:[%s5 + $0x3c] sm:$0xf]
    %v350 = vunpack.c.l.b16 %v330
    %v351 = vunpack.c.l.b16 %v331
    %v352 = vpack.c.b16 %v351, %v350
    %v370 = vunpack.c.l.b16 %v332
    %v371 = vunpack.c.l.b16 %v333
    %v372 = vunpack.c.l.b16 %v334
    %v373 = vunpack.c.l.b16 %v335
    %v374 = vunpack.c.l.b16 %v336
    %v375 = vunpack.c.l.b16 %v337
    %v376 = vunpack.c.l.b16 %v338
    %v377 = vunpack.c.l.b16 %v339
    %v378 = vunpack.c.l.b16 %v340
    %v379 = vunpack.c.l.b16 %v341
    %v380 = vunpack.c.l.b16 %v342
    %v381 = vunpack.c.l.b16 %v343
    %v382 = vunpack.c.l.b16 %v344
    %v383 = vunpack.c.l.b16 %v345
    %v384 = vunpack.c.l.b16 %v346
    %v385 = vunpack.c.l.b16 %v347
    %v386 = vpack.c.b16 %v371, %v370
    %v387 = vpack.c.b16 %v373, %v372
    %v388 = vpack.c.b16 %v375, %v374
    %v389 = vpack.c.b16 %v377, %v376
    %v390 = vpack.c.b16 %v379, %v378
    %v391 = vpack.c.b16 %v381, %v380
    %v392 = vpack.c.b16 %v383, %v382
    %v393 = vpack.c.b16 %v385, %v384
    %402 = vmatprep.subr.bf16.mxu0 0
    %403 = vmatpush1.bf16.msra.mxu0 %v386
    %404 = vmatprep.subr.bf16.mxu0 0
    %405 = vmatpush1.bf16.msra.mxu0 %v387
    %406 = vmatprep.subr.bf16.mxu0 0
    %407 = vmatpush1.bf16.msra.mxu0 %v388
    %408 = vmatprep.subr.bf16.mxu0 0
    %409 = vmatpush1.bf16.msra.mxu0 %v389
    %410 = vmatprep.subr.bf16.mxu0 0
    %411 = vmatpush1.bf16.msra.mxu0 %v390
    %412 = vmatprep.subr.bf16.mxu0 0
    %413 = vmatpush1.bf16.msra.mxu0 %v391
    %414 = vmatprep.subr.bf16.mxu0 0
    %415 = vmatpush1.bf16.msra.mxu0 %v392
    %416 = vmatprep.subr.bf16.mxu0 0
    %417 = vmatpush1.bf16.msra.mxu0 %v393
    %418 = vmatprep.subr.bf16.mxu0 0
    %419 = vmatpush1.bf16.msra.mxu0 0
    %420 = vmatprep.subr.bf16.mxu0 0
    %421 = vmatpush1.bf16.msra.mxu0 0
    %422 = vmatprep.subr.bf16.mxu0 0
    %423 = vmatpush1.bf16.msra.mxu0 0
    %424 = vmatprep.subr.bf16.mxu0 0
    %425 = vmatpush1.bf16.msra.mxu0 0
    %426 = vmatprep.subr.bf16.mxu0 0
    %427 = vmatpush1.bf16.msra.mxu0 0
    %428 = vmatprep.subr.bf16.mxu0 0
    %429 = vmatpush1.bf16.msra.mxu0 0
    %430 = vmatprep.subr.bf16.mxu0 0
    %431 = vmatpush1.bf16.msra.mxu0 0
    %432 = vmatprep.subr.bf16.mxu0 0
    %433 = vmatpush1.bf16.msra.mxu0 0
    %434 = vmatprep.mubr.bf16.mxu0 0
    %435 = vmatmul.mubr.bf16.gmra.mrb[0].mxu0 %v352
    %v436 = vpop.f32.mrb[0].mxu0
    %v437 = vadd.f32 0.0, %v436
    %v438 = vpop.f32.mrb[0].mxu0
    %v439 = vpop.f32.mrb[0].mxu0
    %v440 = vadd.f32 0.0, %v439
    %v441 = vpop.f32.mrb[0].mxu0
    %442 = vdwg.mxu0
    %vm443 = vcmp.gt.f32.partialorder %v437, 0.0
    %vm444 = vcmp.gt.f32.partialorder %v440, 0.0
    %v445 = vsel %vm443, %v324, -inf
    %v446 = vsel %vm444, %v327, -inf
    %vm447 = vcmask 31744
    %v448 = vsel %vm447, %v445, -inf
    %v449 = vrot.slane %v448, 4
    %v450 = vmax.f32 %v448, %v449
    %v451 = vrot.slane %v450, 2
    %v452 = vmax.f32 %v450, %v451
    %v453 = vrot.slane %v452, 1
    %v454 = vmax.f32 %v452, %v453
    %v455 = vsel %vm447, %v446, -inf
    %v456 = vrot.slane %v455, 4
    %v457 = vmax.f32 %v455, %v456
    %v458 = vrot.slane %v457, 2
    %v459 = vmax.f32 %v457, %v458
    %v460 = vrot.slane %v459, 1
    %v461 = vmax.f32 %v459, %v460
    %v462 = vsub.f32 %v445, %v454
    %v463 = vsub.f32 %v446, %v461
    %v464 = vmul.f32 %v462, 1.442695
    %v465 = vpow.pop %v464
    %v466 = vmul.f32 %v463, 1.442695
    %v467 = vpow.pop %v466
    %v468 = vsel %vm447, %v465, 0.0
    %v469 = vrot.slane %v468, 4
    %v470 = vadd.f32 %v468, %v469
    %v471 = vrot.slane %v470, 2
    %v472 = vadd.f32 %v470, %v471
    %v473 = vrot.slane %v472, 1
    %v474 = vadd.f32 %v472, %v473
    %v475 = vsel %vm447, %v467, 0.0
    %v476 = vrot.slane %v475, 4
    %v477 = vadd.f32 %v475, %v476
    %v478 = vrot.slane %v477, 2
    %v479 = vadd.f32 %v477, %v478
    %v480 = vrot.slane %v479, 1
    %v481 = vadd.f32 %v479, %v480
    %v482 = vrcp.pop %v474
    %v483 = vrcp.pop %v481
    %v484 = vmul.f32 %v465, %v482
    %v485 = vmul.f32 %v467, %v483
    %486 = vst.msk [vmem:[#allocation2] sm:$0xff] %vm447, %v484
    %487 = vst.msk [vmem:[#allocation2 + $0x8] sm:$0xff] %vm447, %v485
    %v488 = vld [vmem:[#allocation2] sm:$0xff]
    %v489 = vld [vmem:[#allocation2 + $0x8] sm:$0xff]
    %v490 = vld [vmem:[%s6] sm:$0xf]
    %v492 = vsel %vm447, %v488, 0
    %v495 = vsel %vm447, %v489, 0
    %vm497 = vcmask 1043456
    %v499 = vsel %vm497, %v490, 0
    %501 = vmatprep.subr.mxu0 0.0
    %502 = vmatpush1.msra.mxu0 %v499
    %503 = vmatprep.subr.mxu0 0.0
    %504 = vmatpush1.msra.mxu0 0.0
    %505 = vmatprep.subr.mxu0 0.0
    %506 = vmatpush1.msra.mxu0 0.0
    %507 = vmatprep.subr.mxu0 0.0
    %508 = vmatpush1.msra.mxu0 0.0
    %509 = vmatprep.subr.mxu0 0.0
    %510 = vmatpush1.msra.mxu0 0.0
    %511 = vmatprep.subr.mxu0 0.0
    %512 = vmatpush1.msra.mxu0 0.0
    %513 = vmatprep.subr.mxu0 0.0
    %514 = vmatpush1.msra.mxu0 0.0
    %515 = vmatprep.subr.mxu0 0.0
    %516 = vmatpush1.msra.mxu0 0.0
    %517 = vmatprep.subr.mxu0 0.0
    %518 = vmatpush1.msra.mxu0 0.0
    %519 = vmatprep.subr.mxu0 0.0
    %520 = vmatpush1.msra.mxu0 0.0
    %521 = vmatprep.subr.mxu0 0.0
    %522 = vmatpush1.msra.mxu0 0.0
    %523 = vmatprep.subr.mxu0 0.0
    %524 = vmatpush1.msra.mxu0 0.0
    %525 = vmatprep.subr.mxu0 0.0
    %526 = vmatpush1.msra.mxu0 0.0
    %527 = vmatprep.subr.mxu0 0.0
    %528 = vmatpush1.msra.mxu0 0.0
    %529 = vmatprep.subr.mxu0 0.0
    %530 = vmatpush1.msra.mxu0 0.0
    %531 = vmatprep.subr.mxu0 0.0
    %532 = vmatpush1.msra.mxu0 0.0
    %533 = vmatprep.subr.mxu0 0.0
    %534 = vmatpush1.msra.mxu0 0.0
    %535 = vmatprep.subr.mxu0 0.0
    %536 = vmatpush1.msra.mxu0 0.0
    %537 = vmatprep.subr.mxu0 0.0
    %538 = vmatpush1.msra.mxu0 0.0
    %539 = vmatprep.subr.mxu0 0.0
    %540 = vmatpush1.msra.mxu0 0.0
    %541 = vmatprep.subr.mxu0 0.0
    %542 = vmatpush1.msra.mxu0 0.0
    %543 = vmatprep.subr.mxu0 0.0
    %544 = vmatpush1.msra.mxu0 0.0
    %545 = vmatprep.subr.mxu0 0.0
    %546 = vmatpush1.msra.mxu0 0.0
    %547 = vmatprep.subr.mxu0 0.0
    %548 = vmatpush1.msra.mxu0 0.0
    %549 = vmatprep.subr.mxu0 0.0
    %550 = vmatpush1.msra.mxu0 0.0
    %551 = vmatprep.subr.mxu0 0.0
    %552 = vmatpush1.msra.mxu0 0.0
    %553 = vmatprep.subr.mxu0 0.0
    %554 = vmatpush1.msra.mxu0 0.0
    %555 = vmatprep.subr.mxu0 0.0
    %556 = vmatpush1.msra.mxu0 0.0
    %557 = vmatprep.subr.mxu0 0.0
    %558 = vmatpush1.msra.mxu0 0.0
    %559 = vmatprep.subr.mxu0 0.0
    %560 = vmatpush1.msra.mxu0 0.0
    %561 = vmatprep.subr.mxu0 0.0
    %562 = vmatpush1.msra.mxu0 0.0
    %563 = vmatprep.subr.mxu0 0.0
    %564 = vmatpush1.msra.mxu0 0.0
    %565 = vmatprep.mubr.f32.mxu0 0.0
    %566 = vmatmul.mubr.f32.gmra.mrb[0].mxu0 %v492
    %v567 = vpop.f32.mrb[0].mxu0
    %v568 = vadd.f32 0.0, %v567
    %v569 = vpop.f32.mrb[0].mxu0
    %570 = vmatprep.mubr.f32.mxu0 0.0
    %571 = vmatmul.mubr.f32.gmra.mrb[0].mxu0 %v495
    %v572 = vpop.f32.mrb[0].mxu0
    %v573 = vadd.f32 0.0, %v572
    %v574 = vpop.f32.mrb[0].mxu0
    %575 = vdwg.mxu0
    %v576 = vld [vmem:[#allocation3] sm:$0xf]
    %v577 = vld [vmem:[#allocation3 + $0x4] sm:$0xf]
    %v578 = vunpack.c.l.bf16 %v576
    %v579 = vunpack.c.l.bf16 %v577
    %v580 = vmul.f32 %v568, %v578
    %v581 = vmul.f32 %v573, %v579
    %v582 = vrot.slane %v580, 4
    %v583 = vadd.f32 %v580, %v582
    %v584 = vrot.slane %v583, 2
    %v585 = vadd.f32 %v583, %v584
    %v586 = vrot.slane %v585, 1
    %v587 = vadd.f32 %v585, %v586
    %v588 = vrot.slane %v581, 4
    %v589 = vadd.f32 %v581, %v588
    %v590 = vrot.slane %v589, 2
    %v591 = vadd.f32 %v589, %v590
    %v592 = vrot.slane %v591, 1
    %v593 = vadd.f32 %v591, %v592
    %v594 = vadd.f32 %v587, 0.0
    %v595 = vadd.f32 %v593, 0.0
    %vm598 = vcmask 1041409
    %v599 = vsel %vm598, %v595, %v594
    %601 = vst [vmem:[#allocation6] sm:$0x3] %v599
    // Predicated region
    $region34: #{tpu_custom_call.1} parent=1 // pred_check
      _
    $region35: #{tpu_custom_call.1} parent=1 // pred_check_branch
      %603 = sbr.rel (0) target = $region37
    $region36: #{tpu_custom_call.1} parent=1 // pred_region
      %s605 = ssub.s32 32, 32
      %606 = vsyncadd [#allocation5], %s605
      %s608 = sshll.u32 [#allocation6], 4
      %s609 = int_to_ptr.vmem [resolvable:$true] %s608
      %611 = dma.vmem_to_hbm [thread:$0]  %s609, 32, %s7, [#allocation5]
    $region37: #{tpu_custom_call.1} parent=1 // pred_fallthru
      _
    // Predicated region
    $region38: #{tpu_custom_call.1} parent=1 // pred_check
      _
    $region39: #{tpu_custom_call.1} parent=1 // pred_check_branch
      %613 = sbr.rel (0) target = $region41
    $region40: #{tpu_custom_call.1} parent=1 // pred_region
      %614 = dma.done [#allocation5], 32
    $region41: #{tpu_custom_call.1} parent=1 // pred_fallthru
      _
    %615 = vsyncpa [#allocation4], 1
    %616 = vsyncpa [#allocation5], 1

</llo_original>
